<compile_context>
chip_gen: v5e
topology: v5e:2x2
jax: 0.10.0
libtpu: 0.0.40
codegen_flags: <defaults>
</compile_context>

<pallas_src>
import math

import jax
import jax.numpy as jnp
from jax import lax
from jax.experimental import pallas as pl
from jax.experimental.pallas import tpu as pltpu


# --------------------------- fused MBConv kernel ---------------------------
def make_mbconv_kernel(W, HW, K, P, Cmid, NB, LHW):
    taps = [(dy, dx) for dy in range(K) for dx in range(K)]
    t_center = P * K + P                       # zero-offset tap (dy=P, dx=P)
    inv_hw = 1.0 / HW

    def kernel(x_ref, wexp_ref, b1_ref,
               wdm_ref, b2_ref,
               sew1_ref, seb1_ref, sew2t_ref, seb2_ref,
               wproj_ref, b3_ref, o_ref):
        x = x_ref[0]                                                    # (Cin, LHW) f32

        # ---- Stage 1: 1x1 expand conv (MXU, bf16 operands, f32 acc). BN scale
        # is pre-folded into wexp; only bias-add + ReLU remain on the VPU.
        a1 = jnp.dot(wexp_ref[...], x.astype(jnp.bfloat16),
                     preferred_element_type=jnp.float32)
        a1 = jnp.maximum(a1 + b1_ref[...], 0.0)                         # (Cmid, LHW)

        # ---- Stage 2: depthwise KxK conv via XLU lane rolls. Tap weight, BN
        # scale and zero-pad halo mask are pre-folded into wdm[t], so each tap
        # is exactly one mul + one add on the VALU (the saturating slot).
        # TODO(synk): chunk Cmid here once Cmid grows beyond ~64 to bound vreg
        #             live ranges (a1/shifted/acc) and avoid spills.
        acc = a1 * wdm_ref[t_center]
        for t, (dy, dx) in enumerate(taps):
            if t == t_center:
                continue
            s = (dy - P) * W + (dx - P)                                 # flat offset
            # shifted[c, i] = a1[c, (i + s) mod LHW]; anything rolled across an
            # image/padding boundary is zeroed by the mask folded into wdm[t].
            shifted = pltpu.roll(a1, shift=(-s) % LHW, axis=1)
            acc = acc + shifted * wdm_ref[t]
        a2 = jnp.maximum(acc + b2_ref[...], 0.0)                        # (Cmid, LHW)

        # ---- Stage 3a: SE gate (per-image avg-pool + tiny MLP, f32 on VPU/XLU) ----
        gates = []
        for b in range(NB):
            seg = a2[:, b * HW:(b + 1) * HW]
            pooled = jnp.sum(seg, axis=1, keepdims=True) * inv_hw       # (Cmid, 1)
            h = jnp.sum(pooled * sew1_ref[...], axis=0, keepdims=True) + seb1_ref[...]
            h = jnp.maximum(h, 0.0)                                     # (1, hid)
            g = jnp.sum(sew2t_ref[...] * h, axis=1, keepdims=True) + seb2_ref[...]
            gates.append(jax.nn.sigmoid(g))                             # (Cmid, 1)
        if NB == 1 and LHW == HW:
            gated = a2 * gates[0]
        else:
            segs = [a2[:, b * HW:(b + 1) * HW] * gates[b] for b in range(NB)]
            if LHW > NB * HW:
                segs.append(a2[:, NB * HW:])   # lane padding; sliced off by wrapper
            gated = jnp.concatenate(segs, axis=1)

        # ---- Stage 3b: 1x1 project conv (MXU, bf16 operands) + residual. BN
        # scale pre-folded into wproj; residual add uses the exact f32 input.
        y = jnp.dot(wproj_ref[...], gated.astype(jnp.bfloat16),
                    preferred_element_type=jnp.float32)
        o_ref[0] = y + b3_ref[...] + x                                  # (Cout, LHW)

    return kernel


def mbconv_forward(x_nchw, params, images_per_step=None):
    """MBConv forward. x_nchw: (N, Cin, H, W) float32 -> (N, Cout, H, W)."""
    N, Cin, H, W = x_nchw.shape
    w_exp = params["w_exp"]                       # (Cin, Cmid)
    s1, b1 = params["bn1_scale"], params["bn1_bias"]
    w_dw = params["w_dw"]                         # (K, K, Cmid)
    s2, b2 = params["bn2_scale"], params["bn2_bias"]
    se_w1, se_b1 = params["se_w1"], params["se_b1"]   # (Cmid, hid), (hid,)
    se_w2, se_b2 = params["se_w2"], params["se_b2"]   # (hid, Cmid), (Cmid,)
    w_proj = params["w_proj"]                     # (Cmid, Cout)
    s3, b3 = params["bn3_scale"], params["bn3_bias"]

    Cmid = w_exp.shape[1]
    Cout = w_proj.shape[1]
    K = w_dw.shape[0]
    P = (K - 1) // 2
    hid = se_w1.shape[1]
    HW = H * W
    assert Cin == Cout, "residual path requires in_channel == out_channel (keepdim=True)"

    f32 = jnp.float32
    bf16 = jnp.bfloat16

    # --- choose how many images share one grid step (flattened into lanes).
    # Keep the grid length >= 2 so v7x's two TensorCores both get work.
    if images_per_step is None:
        images_per_step = 1
        for nb in range(min(N, 8), 0, -1):
            if N % nb == 0 and (N // nb >= 2 or (N == 1 and nb == 1)):
                images_per_step = nb
                break
    NB = images_per_step
    assert N % NB == 0
    G = N // NB
    LHW0 = NB * HW
    LHW = ((LHW0 + 127) // 128) * 128             # lane-dense (multiple of 128)
    pad = LHW - LHW0

    # x laid out as (grid, Cin, NB*HW): channels on sublanes, batched spatial on lanes.
    x_flat = (x_nchw.reshape(G, NB, Cin, HW).transpose(0, 2, 1, 3)
              .reshape(G, Cin, LHW0).astype(f32))
    if pad:
        x_flat = jnp.pad(x_flat, ((0, 0), (0, 0), (0, pad)))

    # --- fold BN scales into the conv weights (host-side, exact) and cast the
    # MXU operands to bf16 (f32 accumulation is requested in the kernel).
    w_exp_f = (jnp.transpose(w_exp).astype(f32) * s1[:, None]).astype(bf16)   # (Cmid, Cin)
    w_proj_f = (jnp.transpose(w_proj).astype(f32) * s3[:, None]).astype(bf16)  # (Cout, Cmid)
    se_w2_t = jnp.transpose(se_w2).astype(f32)                                 # (Cmid, hid)

    # --- fold depthwise weight * BN scale * zero-pad halo mask into one constant
    # wdm of shape (K*K, Cmid, LHW); the per-tap kernel body is then mul+add only.
    rows = jnp.arange(HW, dtype=jnp.int32) // W
    cols = jnp.arange(HW, dtype=jnp.int32) % W
    mask_list = []
    for dy in range(K):
        for dx in range(K):
            oy, ox = dy - P, dx - P
            valid = ((rows + oy >= 0) & (rows + oy < H) &
                     (cols + ox >= 0) & (cols + ox < W))
            mask_list.append(valid)
    mask = jnp.stack(mask_list).astype(f32)                   # (K*K, HW)
    mask = jnp.tile(mask, (1, NB))                            # (K*K, NB*HW)
    if pad:
        mask = jnp.pad(mask, ((0, 0), (0, pad)))              # zeros in lane padding
    w_dw_s = (w_dw.reshape(K * K, Cmid).astype(f32) * s2[None, :])     # (K*K, Cmid)
    wdm = w_dw_s[:, :, None] * mask[:, None, :]               # (K*K, Cmid, LHW) f32

    b1c = b1.reshape(Cmid, 1).astype(f32)
    b2c = b2.reshape(Cmid, 1).astype(f32)
    b3c = b3.reshape(Cout, 1).astype(f32)
    se_w1_f = se_w1.astype(f32)
    se_b1_f = se_b1.reshape(1, hid).astype(f32)
    se_b2_f = se_b2.reshape(Cmid, 1).astype(f32)

    def const(shape):
        # TODO(synk): at real EfficientNet widths these constants should be
        # single-buffered (pl.Buffered(1)) or loaded once into scratch to halve
        # their VMEM footprint under v7x's 64 MiB budget.
        return pl.BlockSpec(shape, lambda g, _s=shape: tuple(0 for _ in _s))

    consts = (w_exp_f, b1c, wdm, b2c, se_w1_f, se_b1_f, se_w2_t, se_b2_f,
              w_proj_f, b3c)

    # --- explicit VMEM limit: 2x (double-buffered IO + constants) + live tiles,
    # clamped to stay inside v7x's 64 MiB physical VMEM and above v5e's 16 MiB
    # scoped default.
    const_bytes = sum(int(a.size) * a.dtype.itemsize for a in consts)
    io_bytes = 4 * (Cin + Cout) * LHW
    live_bytes = 4 * 6 * Cmid * LHW               # a1/shifted/acc/a2/gated/y
    vmem_limit = int(min(max(2 * (const_bytes + io_bytes) + live_bytes, 32 << 20),
                         56 << 20))

    cost = pl.CostEstimate(
        flops=2 * N * HW * Cmid * (Cin + K * K + Cout) + 4 * N * Cmid * hid,
        transcendentals=N * Cmid,
        bytes_accessed=4 * (N * Cin * HW + N * Cout * HW) + G * const_bytes,
    )

    out_flat = pl.pallas_call(
        make_mbconv_kernel(W, HW, K, P, Cmid, NB, LHW),
        out_shape=jax.ShapeDtypeStruct((G, Cout, LHW), f32),
        grid=(G,),
        in_specs=[
            pl.BlockSpec((1, Cin, LHW), lambda g: (g, 0, 0)),     # x
            const((Cmid, Cin)),                                   # w_exp^T * s1 (bf16)
            const((Cmid, 1)),                                     # bn1 bias
            const((K * K, Cmid, LHW)),                            # folded dw weight*mask*s2
            const((Cmid, 1)),                                     # bn2 bias
            const((Cmid, hid)), const((1, hid)),                  # SE layer 1
            const((Cmid, hid)), const((Cmid, 1)),                 # SE layer 2 (w2^T)
            const((Cout, Cmid)),                                  # w_proj^T * s3 (bf16)
            const((Cout, 1)),                                     # bn3 bias
        ],
        out_specs=pl.BlockSpec((1, Cout, LHW), lambda g: (g, 0, 0)),
        compiler_params=pltpu.CompilerParams(
            dimension_semantics=("parallel",),                    # grid -> both v7x TCs
            vmem_limit_bytes=vmem_limit),
        cost_estimate=cost,
    )(x_flat, w_exp_f, b1c, wdm, b2c,
      se_w1_f, se_b1_f, se_w2_t, se_b2_f, w_proj_f, b3c)

    out = (out_flat[..., :LHW0].reshape(G, Cout, NB, HW)
           .transpose(0, 2, 1, 3).reshape(N, Cout, H, W))
    return out


# ---------------- Pure-JAX reference (for correctness check) ----------------
def mbconv_reference(x_nchw, params):
    w_exp = params["w_exp"]
    s1, b1 = params["bn1_scale"], params["bn1_bias"]
    w_dw = params["w_dw"]
    s2, b2 = params["bn2_scale"], params["bn2_bias"]
    se_w1, se_b1 = params["se_w1"], params["se_b1"]
    se_w2, se_b2 = params["se_w2"], params["se_b2"]
    w_proj = params["w_proj"]
    s3, b3 = params["bn3_scale"], params["bn3_bias"]
    Cmid = w_exp.shape[1]
    K = w_dw.shape[0]
    P = (K - 1) // 2

    x = jnp.transpose(x_nchw, (0, 2, 3, 1)).astype(jnp.float32)     # NHWC
    y = jnp.einsum("nhwc,cd->nhwd", x, w_exp, precision=lax.Precision.HIGHEST)
    y = jnp.maximum(y * s1 + b1, 0.0)
    dw = lax.conv_general_dilated(
        y, w_dw.reshape(K, K, 1, Cmid),
        window_strides=(1, 1), padding=[(P, P), (P, P)],
        dimension_numbers=("NHWC", "HWIO", "NHWC"),
        feature_group_count=Cmid, precision=lax.Precision.HIGHEST)
    y2 = jnp.maximum(dw * s2 + b2, 0.0)
    pooled = jnp.mean(y2, axis=(1, 2))
    h = jnp.maximum(pooled @ se_w1 + se_b1, 0.0)
    gate = jax.nn.sigmoid(h @ se_w2 + se_b2)
    y3 = y2 * gate[:, None, None, :]
    y4 = jnp.einsum("nhwc,cd->nhwd", y3, w_proj, precision=lax.Precision.HIGHEST)
    y4 = y4 * s3 + b3 + x
    return jnp.transpose(y4, (0, 3, 1, 2))


if __name__ == "__main__":
    # Shapes consistent with MBConv_block(in_channel=4, out_channel=4, kernel_size=5,
    # channel_expand_factor=6, keepdim=True)
    N, Cin, H, W = 2, 4, 16, 16
    Cout = 4
    K = 5
    expand = 6
    Cmid = Cin * expand                       # 24
    hid = int(Cmid / expand // 4)             # SE_block: int(in_channel/expand // 4) = 1

    key = jax.random.PRNGKey(0)
    ks = jax.random.split(key, 12)

    def bn_fold(k, c, eps=1e-5):
        k1, k2, k3, k4 = jax.random.split(k, 4)
        gamma = 1.0 + 0.1 * jax.random.normal(k1, (c,), jnp.float32)
        beta = 0.1 * jax.random.normal(k2, (c,), jnp.float32)
        mean = 0.1 * jax.random.normal(k3, (c,), jnp.float32)
        var = 1.0 + 0.1 * jax.random.uniform(k4, (c,), jnp.float32)
        scale = gamma / jnp.sqrt(var + eps)
        bias = beta - mean * scale
        return scale, bias

    bn1_scale, bn1_bias = bn_fold(ks[1], Cmid)
    bn2_scale, bn2_bias = bn_fold(ks[3], Cmid)
    bn3_scale, bn3_bias = bn_fold(ks[9], Cout)

    params = {
        "w_exp": jax.random.normal(ks[0], (Cin, Cmid), jnp.float32) / math.sqrt(Cin),
        "bn1_scale": bn1_scale, "bn1_bias": bn1_bias,
        "w_dw": jax.random.normal(ks[2], (K, K, Cmid), jnp.float32) / float(K),
        "bn2_scale": bn2_scale, "bn2_bias": bn2_bias,
        "se_w1": jax.random.normal(ks[4], (Cmid, hid), jnp.float32) / math.sqrt(Cmid),
        "se_b1": 0.1 * jax.random.normal(ks[5], (hid,), jnp.float32),
        "se_w2": jax.random.normal(ks[6], (hid, Cmid), jnp.float32) / math.sqrt(max(hid, 1)),
        "se_b2": 0.1 * jax.random.normal(ks[7], (Cmid,), jnp.float32),
        "w_proj": jax.random.normal(ks[8], (Cmid, Cout), jnp.float32) / math.sqrt(Cmid),
        "bn3_scale": bn3_scale, "bn3_bias": bn3_bias,
    }

    x = jax.random.normal(ks[10], (N, Cin, H, W), jnp.float32)

    out = mbconv_forward(x, params)
    out = jax.block_until_ready(out)

    ref = mbconv_reference(x, params)
    err = float(jnp.max(jnp.abs(out - ref)))

    assert out.shape == (N, Cout, H, W)
    # Tolerance accounts for bf16 MXU operands (f32 accumulation) vs. the
    # f32/HIGHEST-precision reference; depthwise/SE/bias math is exact f32.
    if err < 5e-2:
        print("KERNEL_OK")
    else:
        print(f"MISMATCH max_abs_err={err}")
</pallas_src>

<mosaic_0001>
module attributes {stable_mosaic.version = 11 : i64} {
  func.func @kernel(%arg0: i32, %arg1: memref<1x4x256xf32, #tpu.memory_space<vmem>>, %arg2: memref<24x4xbf16, #tpu.memory_space<vmem>>, %arg3: memref<24x1xf32, #tpu.memory_space<vmem>>, %arg4: memref<25x24x256xf32, #tpu.memory_space<vmem>>, %arg5: memref<24x1xf32, #tpu.memory_space<vmem>>, %arg6: memref<24x1xf32, #tpu.memory_space<vmem>>, %arg7: memref<1x1xf32, #tpu.memory_space<vmem>>, %arg8: memref<24x1xf32, #tpu.memory_space<vmem>>, %arg9: memref<24x1xf32, #tpu.memory_space<vmem>>, %arg10: memref<4x24xbf16, #tpu.memory_space<vmem>>, %arg11: memref<4x1xf32, #tpu.memory_space<vmem>>, %arg12: memref<1x4x256xf32, #tpu.memory_space<vmem>>) attributes {dimension_semantics = [#tpu.dimension_semantics<parallel>], iteration_bounds = array<i64: 2>, scalar_prefetch = 0 : i64, scratch_operands = 0 : i64, tpu.core_type = #tpu.core_type<tc>, window_params = [{transform_indices = @transform_0, window_bounds = array<i64: 1, 4, 256>}, {pipeline_mode = #tpu.pipeline_mode<synchronous>, transform_indices = @transform_1, window_bounds = array<i64: 24, 4>}, {pipeline_mode = #tpu.pipeline_mode<synchronous>, transform_indices = @transform_2, window_bounds = array<i64: 24, 1>}, {pipeline_mode = #tpu.pipeline_mode<synchronous>, transform_indices = @transform_3, window_bounds = array<i64: 25, 24, 256>}, {pipeline_mode = #tpu.pipeline_mode<synchronous>, transform_indices = @transform_4, window_bounds = array<i64: 24, 1>}, {pipeline_mode = #tpu.pipeline_mode<synchronous>, transform_indices = @transform_5, window_bounds = array<i64: 24, 1>}, {pipeline_mode = #tpu.pipeline_mode<synchronous>, transform_indices = @transform_6, window_bounds = array<i64: 1, 1>}, {pipeline_mode = #tpu.pipeline_mode<synchronous>, transform_indices = @transform_7, window_bounds = array<i64: 24, 1>}, {pipeline_mode = #tpu.pipeline_mode<synchronous>, transform_indices = @transform_8, window_bounds = array<i64: 24, 1>}, {pipeline_mode = #tpu.pipeline_mode<synchronous>, transform_indices = @transform_9, window_bounds = array<i64: 4, 24>}, {pipeline_mode = #tpu.pipeline_mode<synchronous>, transform_indices = @transform_10, window_bounds = array<i64: 4, 1>}, {transform_indices = @transform_11, window_bounds = array<i64: 1, 4, 256>}]} {
    %c0 = arith.constant 0 : index
    %c0_0 = arith.constant 0 : index
    %c0_1 = arith.constant 0 : index
    %0 = vector.load %arg1[%c0, %c0_0, %c0_1] : memref<1x4x256xf32, #tpu.memory_space<vmem>>, vector<1x4x256xf32>
    %1 = vector.shape_cast %0 : vector<1x4x256xf32> to vector<4x256xf32>
    %c0_2 = arith.constant 0 : index
    %c0_3 = arith.constant 0 : index
    %2 = vector.load %arg2[%c0_2, %c0_3] : memref<24x4xbf16, #tpu.memory_space<vmem>>, vector<24x4xbf16>
    %3 = arith.truncf %1 : vector<4x256xf32> to vector<4x256xbf16>
    %cst = arith.constant dense<0.000000e+00> : vector<24x256xf32>
    %4 = tpu.matmul %2, %3, %cst {dimension_numbers = #tpu.dot_dimension_numbers<[1], [0], [0], [1], [0, 0, 1, 1], [], []>} : vector<24x4xbf16>, vector<4x256xbf16>, vector<24x256xf32> -> vector<24x256xf32>
    %c0_4 = arith.constant 0 : index
    %c0_5 = arith.constant 0 : index
    %5 = vector.load %arg3[%c0_4, %c0_5] : memref<24x1xf32, #tpu.memory_space<vmem>>, vector<24x1xf32>
    %6 = vector.broadcast %5 : vector<24x1xf32> to vector<24x256xf32>
    %7 = arith.addf %4, %6 : vector<24x256xf32>
    %cst_6 = arith.constant 0.000000e+00 : f32
    %8 = vector.broadcast %cst_6 : f32 to vector<24x256xf32>
    %9 = arith.maximumf %7, %8 : vector<24x256xf32>
    %c12 = arith.constant 12 : index
    %c0_7 = arith.constant 0 : index
    %c0_8 = arith.constant 0 : index
    %10 = vector.load %arg4[%c12, %c0_7, %c0_8] : memref<25x24x256xf32, #tpu.memory_space<vmem>>, vector<1x24x256xf32>
    %11 = vector.shape_cast %10 : vector<1x24x256xf32> to vector<24x256xf32>
    %12 = arith.mulf %9, %11 : vector<24x256xf32>
    %c34_i32 = arith.constant 34 : i32
    %13 = tpu.dynamic_rotate %9 by %c34_i32 dim 1 : vector<24x256xf32>, i32 -> vector<24x256xf32>
    %c0_9 = arith.constant 0 : index
    %c0_10 = arith.constant 0 : index
    %c0_11 = arith.constant 0 : index
    %14 = vector.load %arg4[%c0_9, %c0_10, %c0_11] : memref<25x24x256xf32, #tpu.memory_space<vmem>>, vector<1x24x256xf32>
    %15 = vector.shape_cast %14 : vector<1x24x256xf32> to vector<24x256xf32>
    %16 = arith.mulf %13, %15 : vector<24x256xf32>
    %17 = arith.addf %12, %16 : vector<24x256xf32>
    %c33_i32 = arith.constant 33 : i32
    %18 = tpu.dynamic_rotate %9 by %c33_i32 dim 1 : vector<24x256xf32>, i32 -> vector<24x256xf32>
    %c1 = arith.constant 1 : index
    %c0_12 = arith.constant 0 : index
    %c0_13 = arith.constant 0 : index
    %19 = vector.load %arg4[%c1, %c0_12, %c0_13] : memref<25x24x256xf32, #tpu.memory_space<vmem>>, vector<1x24x256xf32>
    %20 = vector.shape_cast %19 : vector<1x24x256xf32> to vector<24x256xf32>
    %21 = arith.mulf %18, %20 : vector<24x256xf32>
    %22 = arith.addf %17, %21 : vector<24x256xf32>
    %c32_i32 = arith.constant 32 : i32
    %23 = tpu.dynamic_rotate %9 by %c32_i32 dim 1 : vector<24x256xf32>, i32 -> vector<24x256xf32>
    %c2 = arith.constant 2 : index
    %c0_14 = arith.constant 0 : index
    %c0_15 = arith.constant 0 : index
    %24 = vector.load %arg4[%c2, %c0_14, %c0_15] : memref<25x24x256xf32, #tpu.memory_space<vmem>>, vector<1x24x256xf32>
    %25 = vector.shape_cast %24 : vector<1x24x256xf32> to vector<24x256xf32>
    %26 = arith.mulf %23, %25 : vector<24x256xf32>
    %27 = arith.addf %22, %26 : vector<24x256xf32>
    %c31_i32 = arith.constant 31 : i32
    %28 = tpu.dynamic_rotate %9 by %c31_i32 dim 1 : vector<24x256xf32>, i32 -> vector<24x256xf32>
    %c3 = arith.constant 3 : index
    %c0_16 = arith.constant 0 : index
    %c0_17 = arith.constant 0 : index
    %29 = vector.load %arg4[%c3, %c0_16, %c0_17] : memref<25x24x256xf32, #tpu.memory_space<vmem>>, vector<1x24x256xf32>
    %30 = vector.shape_cast %29 : vector<1x24x256xf32> to vector<24x256xf32>
    %31 = arith.mulf %28, %30 : vector<24x256xf32>
    %32 = arith.addf %27, %31 : vector<24x256xf32>
    %c30_i32 = arith.constant 30 : i32
    %33 = tpu.dynamic_rotate %9 by %c30_i32 dim 1 : vector<24x256xf32>, i32 -> vector<24x256xf32>
    %c4 = arith.constant 4 : index
    %c0_18 = arith.constant 0 : index
    %c0_19 = arith.constant 0 : index
    %34 = vector.load %arg4[%c4, %c0_18, %c0_19] : memref<25x24x256xf32, #tpu.memory_space<vmem>>, vector<1x24x256xf32>
    %35 = vector.shape_cast %34 : vector<1x24x256xf32> to vector<24x256xf32>
    %36 = arith.mulf %33, %35 : vector<24x256xf32>
    %37 = arith.addf %32, %36 : vector<24x256xf32>
    %c18_i32 = arith.constant 18 : i32
    %38 = tpu.dynamic_rotate %9 by %c18_i32 dim 1 : vector<24x256xf32>, i32 -> vector<24x256xf32>
    %c5 = arith.constant 5 : index
    %c0_20 = arith.constant 0 : index
    %c0_21 = arith.constant 0 : index
    %39 = vector.load %arg4[%c5, %c0_20, %c0_21] : memref<25x24x256xf32, #tpu.memory_space<vmem>>, vector<1x24x256xf32>
    %40 = vector.shape_cast %39 : vector<1x24x256xf32> to vector<24x256xf32>
    %41 = arith.mulf %38, %40 : vector<24x256xf32>
    %42 = arith.addf %37, %41 : vector<24x256xf32>
    %c17_i32 = arith.constant 17 : i32
    %43 = tpu.dynamic_rotate %9 by %c17_i32 dim 1 : vector<24x256xf32>, i32 -> vector<24x256xf32>
    %c6 = arith.constant 6 : index
    %c0_22 = arith.constant 0 : index
    %c0_23 = arith.constant 0 : index
    %44 = vector.load %arg4[%c6, %c0_22, %c0_23] : memref<25x24x256xf32, #tpu.memory_space<vmem>>, vector<1x24x256xf32>
    %45 = vector.shape_cast %44 : vector<1x24x256xf32> to vector<24x256xf32>
    %46 = arith.mulf %43, %45 : vector<24x256xf32>
    %47 = arith.addf %42, %46 : vector<24x256xf32>
    %c16_i32 = arith.constant 16 : i32
    %48 = tpu.dynamic_rotate %9 by %c16_i32 dim 1 : vector<24x256xf32>, i32 -> vector<24x256xf32>
    %c7 = arith.constant 7 : index
    %c0_24 = arith.constant 0 : index
    %c0_25 = arith.constant 0 : index
    %49 = vector.load %arg4[%c7, %c0_24, %c0_25] : memref<25x24x256xf32, #tpu.memory_space<vmem>>, vector<1x24x256xf32>
    %50 = vector.shape_cast %49 : vector<1x24x256xf32> to vector<24x256xf32>
    %51 = arith.mulf %48, %50 : vector<24x256xf32>
    %52 = arith.addf %47, %51 : vector<24x256xf32>
    %c15_i32 = arith.constant 15 : i32
    %53 = tpu.dynamic_rotate %9 by %c15_i32 dim 1 : vector<24x256xf32>, i32 -> vector<24x256xf32>
    %c8 = arith.constant 8 : index
    %c0_26 = arith.constant 0 : index
    %c0_27 = arith.constant 0 : index
    %54 = vector.load %arg4[%c8, %c0_26, %c0_27] : memref<25x24x256xf32, #tpu.memory_space<vmem>>, vector<1x24x256xf32>
    %55 = vector.shape_cast %54 : vector<1x24x256xf32> to vector<24x256xf32>
    %56 = arith.mulf %53, %55 : vector<24x256xf32>
    %57 = arith.addf %52, %56 : vector<24x256xf32>
    %c14_i32 = arith.constant 14 : i32
    %58 = tpu.dynamic_rotate %9 by %c14_i32 dim 1 : vector<24x256xf32>, i32 -> vector<24x256xf32>
    %c9 = arith.constant 9 : index
    %c0_28 = arith.constant 0 : index
    %c0_29 = arith.constant 0 : index
    %59 = vector.load %arg4[%c9, %c0_28, %c0_29] : memref<25x24x256xf32, #tpu.memory_space<vmem>>, vector<1x24x256xf32>
    %60 = vector.shape_cast %59 : vector<1x24x256xf32> to vector<24x256xf32>
    %61 = arith.mulf %58, %60 : vector<24x256xf32>
    %62 = arith.addf %57, %61 : vector<24x256xf32>
    %c2_i32 = arith.constant 2 : i32
    %63 = tpu.dynamic_rotate %9 by %c2_i32 dim 1 : vector<24x256xf32>, i32 -> vector<24x256xf32>
    %c10 = arith.constant 10 : index
    %c0_30 = arith.constant 0 : index
    %c0_31 = arith.constant 0 : index
    %64 = vector.load %arg4[%c10, %c0_30, %c0_31] : memref<25x24x256xf32, #tpu.memory_space<vmem>>, vector<1x24x256xf32>
    %65 = vector.shape_cast %64 : vector<1x24x256xf32> to vector<24x256xf32>
    %66 = arith.mulf %63, %65 : vector<24x256xf32>
    %67 = arith.addf %62, %66 : vector<24x256xf32>
    %c1_i32 = arith.constant 1 : i32
    %68 = tpu.dynamic_rotate %9 by %c1_i32 dim 1 : vector<24x256xf32>, i32 -> vector<24x256xf32>
    %c11 = arith.constant 11 : index
    %c0_32 = arith.constant 0 : index
    %c0_33 = arith.constant 0 : index
    %69 = vector.load %arg4[%c11, %c0_32, %c0_33] : memref<25x24x256xf32, #tpu.memory_space<vmem>>, vector<1x24x256xf32>
    %70 = vector.shape_cast %69 : vector<1x24x256xf32> to vector<24x256xf32>
    %71 = arith.mulf %68, %70 : vector<24x256xf32>
    %72 = arith.addf %67, %71 : vector<24x256xf32>
    %c255_i32 = arith.constant 255 : i32
    %73 = tpu.dynamic_rotate %9 by %c255_i32 dim 1 : vector<24x256xf32>, i32 -> vector<24x256xf32>
    %c13 = arith.constant 13 : index
    %c0_34 = arith.constant 0 : index
    %c0_35 = arith.constant 0 : index
    %74 = vector.load %arg4[%c13, %c0_34, %c0_35] : memref<25x24x256xf32, #tpu.memory_space<vmem>>, vector<1x24x256xf32>
    %75 = vector.shape_cast %74 : vector<1x24x256xf32> to vector<24x256xf32>
    %76 = arith.mulf %73, %75 : vector<24x256xf32>
    %77 = arith.addf %72, %76 : vector<24x256xf32>
    %c254_i32 = arith.constant 254 : i32
    %78 = tpu.dynamic_rotate %9 by %c254_i32 dim 1 : vector<24x256xf32>, i32 -> vector<24x256xf32>
    %c14 = arith.constant 14 : index
    %c0_36 = arith.constant 0 : index
    %c0_37 = arith.constant 0 : index
    %79 = vector.load %arg4[%c14, %c0_36, %c0_37] : memref<25x24x256xf32, #tpu.memory_space<vmem>>, vector<1x24x256xf32>
    %80 = vector.shape_cast %79 : vector<1x24x256xf32> to vector<24x256xf32>
    %81 = arith.mulf %78, %80 : vector<24x256xf32>
    %82 = arith.addf %77, %81 : vector<24x256xf32>
    %c242_i32 = arith.constant 242 : i32
    %83 = tpu.dynamic_rotate %9 by %c242_i32 dim 1 : vector<24x256xf32>, i32 -> vector<24x256xf32>
    %c15 = arith.constant 15 : index
    %c0_38 = arith.constant 0 : index
    %c0_39 = arith.constant 0 : index
    %84 = vector.load %arg4[%c15, %c0_38, %c0_39] : memref<25x24x256xf32, #tpu.memory_space<vmem>>, vector<1x24x256xf32>
    %85 = vector.shape_cast %84 : vector<1x24x256xf32> to vector<24x256xf32>
    %86 = arith.mulf %83, %85 : vector<24x256xf32>
    %87 = arith.addf %82, %86 : vector<24x256xf32>
    %c241_i32 = arith.constant 241 : i32
    %88 = tpu.dynamic_rotate %9 by %c241_i32 dim 1 : vector<24x256xf32>, i32 -> vector<24x256xf32>
    %c16 = arith.constant 16 : index
    %c0_40 = arith.constant 0 : index
    %c0_41 = arith.constant 0 : index
    %89 = vector.load %arg4[%c16, %c0_40, %c0_41] : memref<25x24x256xf32, #tpu.memory_space<vmem>>, vector<1x24x256xf32>
    %90 = vector.shape_cast %89 : vector<1x24x256xf32> to vector<24x256xf32>
    %91 = arith.mulf %88, %90 : vector<24x256xf32>
    %92 = arith.addf %87, %91 : vector<24x256xf32>
    %c240_i32 = arith.constant 240 : i32
    %93 = tpu.dynamic_rotate %9 by %c240_i32 dim 1 : vector<24x256xf32>, i32 -> vector<24x256xf32>
    %c17 = arith.constant 17 : index
    %c0_42 = arith.constant 0 : index
    %c0_43 = arith.constant 0 : index
    %94 = vector.load %arg4[%c17, %c0_42, %c0_43] : memref<25x24x256xf32, #tpu.memory_space<vmem>>, vector<1x24x256xf32>
    %95 = vector.shape_cast %94 : vector<1x24x256xf32> to vector<24x256xf32>
    %96 = arith.mulf %93, %95 : vector<24x256xf32>
    %97 = arith.addf %92, %96 : vector<24x256xf32>
    %c239_i32 = arith.constant 239 : i32
    %98 = tpu.dynamic_rotate %9 by %c239_i32 dim 1 : vector<24x256xf32>, i32 -> vector<24x256xf32>
    %c18 = arith.constant 18 : index
    %c0_44 = arith.constant 0 : index
    %c0_45 = arith.constant 0 : index
    %99 = vector.load %arg4[%c18, %c0_44, %c0_45] : memref<25x24x256xf32, #tpu.memory_space<vmem>>, vector<1x24x256xf32>
    %100 = vector.shape_cast %99 : vector<1x24x256xf32> to vector<24x256xf32>
    %101 = arith.mulf %98, %100 : vector<24x256xf32>
    %102 = arith.addf %97, %101 : vector<24x256xf32>
    %c238_i32 = arith.constant 238 : i32
    %103 = tpu.dynamic_rotate %9 by %c238_i32 dim 1 : vector<24x256xf32>, i32 -> vector<24x256xf32>
    %c19 = arith.constant 19 : index
    %c0_46 = arith.constant 0 : index
    %c0_47 = arith.constant 0 : index
    %104 = vector.load %arg4[%c19, %c0_46, %c0_47] : memref<25x24x256xf32, #tpu.memory_space<vmem>>, vector<1x24x256xf32>
    %105 = vector.shape_cast %104 : vector<1x24x256xf32> to vector<24x256xf32>
    %106 = arith.mulf %103, %105 : vector<24x256xf32>
    %107 = arith.addf %102, %106 : vector<24x256xf32>
    %c226_i32 = arith.constant 226 : i32
    %108 = tpu.dynamic_rotate %9 by %c226_i32 dim 1 : vector<24x256xf32>, i32 -> vector<24x256xf32>
    %c20 = arith.constant 20 : index
    %c0_48 = arith.constant 0 : index
    %c0_49 = arith.constant 0 : index
    %109 = vector.load %arg4[%c20, %c0_48, %c0_49] : memref<25x24x256xf32, #tpu.memory_space<vmem>>, vector<1x24x256xf32>
    %110 = vector.shape_cast %109 : vector<1x24x256xf32> to vector<24x256xf32>
    %111 = arith.mulf %108, %110 : vector<24x256xf32>
    %112 = arith.addf %107, %111 : vector<24x256xf32>
    %c225_i32 = arith.constant 225 : i32
    %113 = tpu.dynamic_rotate %9 by %c225_i32 dim 1 : vector<24x256xf32>, i32 -> vector<24x256xf32>
    %c21 = arith.constant 21 : index
    %c0_50 = arith.constant 0 : index
    %c0_51 = arith.constant 0 : index
    %114 = vector.load %arg4[%c21, %c0_50, %c0_51] : memref<25x24x256xf32, #tpu.memory_space<vmem>>, vector<1x24x256xf32>
    %115 = vector.shape_cast %114 : vector<1x24x256xf32> to vector<24x256xf32>
    %116 = arith.mulf %113, %115 : vector<24x256xf32>
    %117 = arith.addf %112, %116 : vector<24x256xf32>
    %c224_i32 = arith.constant 224 : i32
    %118 = tpu.dynamic_rotate %9 by %c224_i32 dim 1 : vector<24x256xf32>, i32 -> vector<24x256xf32>
    %c22 = arith.constant 22 : index
    %c0_52 = arith.constant 0 : index
    %c0_53 = arith.constant 0 : index
    %119 = vector.load %arg4[%c22, %c0_52, %c0_53] : memref<25x24x256xf32, #tpu.memory_space<vmem>>, vector<1x24x256xf32>
    %120 = vector.shape_cast %119 : vector<1x24x256xf32> to vector<24x256xf32>
    %121 = arith.mulf %118, %120 : vector<24x256xf32>
    %122 = arith.addf %117, %121 : vector<24x256xf32>
    %c223_i32 = arith.constant 223 : i32
    %123 = tpu.dynamic_rotate %9 by %c223_i32 dim 1 : vector<24x256xf32>, i32 -> vector<24x256xf32>
    %c23 = arith.constant 23 : index
    %c0_54 = arith.constant 0 : index
    %c0_55 = arith.constant 0 : index
    %124 = vector.load %arg4[%c23, %c0_54, %c0_55] : memref<25x24x256xf32, #tpu.memory_space<vmem>>, vector<1x24x256xf32>
    %125 = vector.shape_cast %124 : vector<1x24x256xf32> to vector<24x256xf32>
    %126 = arith.mulf %123, %125 : vector<24x256xf32>
    %127 = arith.addf %122, %126 : vector<24x256xf32>
    %c222_i32 = arith.constant 222 : i32
    %128 = tpu.dynamic_rotate %9 by %c222_i32 dim 1 : vector<24x256xf32>, i32 -> vector<24x256xf32>
    %c24 = arith.constant 24 : index
    %c0_56 = arith.constant 0 : index
    %c0_57 = arith.constant 0 : index
    %129 = vector.load %arg4[%c24, %c0_56, %c0_57] : memref<25x24x256xf32, #tpu.memory_space<vmem>>, vector<1x24x256xf32>
    %130 = vector.shape_cast %129 : vector<1x24x256xf32> to vector<24x256xf32>
    %131 = arith.mulf %128, %130 : vector<24x256xf32>
    %132 = arith.addf %127, %131 : vector<24x256xf32>
    %c0_58 = arith.constant 0 : index
    %c0_59 = arith.constant 0 : index
    %133 = vector.load %arg5[%c0_58, %c0_59] : memref<24x1xf32, #tpu.memory_space<vmem>>, vector<24x1xf32>
    %134 = vector.broadcast %133 : vector<24x1xf32> to vector<24x256xf32>
    %135 = arith.addf %132, %134 : vector<24x256xf32>
    %cst_60 = arith.constant 0.000000e+00 : f32
    %136 = vector.broadcast %cst_60 : f32 to vector<24x256xf32>
    %137 = arith.maximumf %135, %136 : vector<24x256xf32>
    %cst_61 = arith.constant dense<0.000000e+00> : vector<24xf32>
    %138 = vector.multi_reduction <add>, %137, %cst_61 [1] : vector<24x256xf32> to vector<24xf32>
    %139 = vector.shape_cast %138 : vector<24xf32> to vector<24x1xf32>
    %cst_62 = arith.constant 3.906250e-03 : f32
    %140 = vector.broadcast %cst_62 : f32 to vector<24x1xf32>
    %141 = arith.mulf %139, %140 : vector<24x1xf32>
    %c0_63 = arith.constant 0 : index
    %c0_64 = arith.constant 0 : index
    %142 = vector.load %arg6[%c0_63, %c0_64] : memref<24x1xf32, #tpu.memory_space<vmem>>, vector<24x1xf32>
    %143 = arith.mulf %141, %142 : vector<24x1xf32>
    %cst_65 = arith.constant dense<0.000000e+00> : vector<1xf32>
    %144 = vector.multi_reduction <add>, %143, %cst_65 [0] : vector<24x1xf32> to vector<1xf32>
    %145 = vector.shape_cast %144 : vector<1xf32> to vector<1x1xf32>
    %c0_66 = arith.constant 0 : index
    %c0_67 = arith.constant 0 : index
    %146 = vector.load %arg7[%c0_66, %c0_67] : memref<1x1xf32, #tpu.memory_space<vmem>>, vector<1x1xf32>
    %147 = arith.addf %145, %146 : vector<1x1xf32>
    %cst_68 = arith.constant 0.000000e+00 : f32
    %148 = vector.broadcast %cst_68 : f32 to vector<1x1xf32>
    %149 = arith.maximumf %147, %148 : vector<1x1xf32>
    %c0_69 = arith.constant 0 : index
    %c0_70 = arith.constant 0 : index
    %150 = vector.load %arg8[%c0_69, %c0_70] : memref<24x1xf32, #tpu.memory_space<vmem>>, vector<24x1xf32>
    %151 = vector.broadcast %149 : vector<1x1xf32> to vector<24x1xf32>
    %152 = arith.mulf %150, %151 : vector<24x1xf32>
    %cst_71 = arith.constant dense<0.000000e+00> : vector<24xf32>
    %153 = vector.multi_reduction <add>, %152, %cst_71 [1] : vector<24x1xf32> to vector<24xf32>
    %154 = vector.shape_cast %153 : vector<24xf32> to vector<24x1xf32>
    %c0_72 = arith.constant 0 : index
    %c0_73 = arith.constant 0 : index
    %155 = vector.load %arg9[%c0_72, %c0_73] : memref<24x1xf32, #tpu.memory_space<vmem>>, vector<24x1xf32>
    %156 = arith.addf %154, %155 : vector<24x1xf32>
    %157 = arith.negf %156 : vector<24x1xf32>
    %158 = math.exp %157 : vector<24x1xf32>
    %cst_74 = arith.constant 1.000000e+00 : f32
    %159 = vector.broadcast %cst_74 : f32 to vector<24x1xf32>
    %160 = arith.addf %159, %158 : vector<24x1xf32>
    %161 = arith.divf %159, %160 : vector<24x1xf32>
    %162 = vector.broadcast %161 : vector<24x1xf32> to vector<24x256xf32>
    %163 = arith.mulf %137, %162 : vector<24x256xf32>
    %c0_75 = arith.constant 0 : index
    %c0_76 = arith.constant 0 : index
    %164 = vector.load %arg10[%c0_75, %c0_76] : memref<4x24xbf16, #tpu.memory_space<vmem>>, vector<4x24xbf16>
    %165 = arith.truncf %163 : vector<24x256xf32> to vector<24x256xbf16>
    %cst_77 = arith.constant dense<0.000000e+00> : vector<4x256xf32>
    %166 = tpu.matmul %164, %165, %cst_77 {dimension_numbers = #tpu.dot_dimension_numbers<[1], [0], [0], [1], [0, 0, 1, 1], [], []>} : vector<4x24xbf16>, vector<24x256xbf16>, vector<4x256xf32> -> vector<4x256xf32>
    %c0_78 = arith.constant 0 : index
    %c0_79 = arith.constant 0 : index
    %167 = vector.load %arg11[%c0_78, %c0_79] : memref<4x1xf32, #tpu.memory_space<vmem>>, vector<4x1xf32>
    %168 = vector.broadcast %167 : vector<4x1xf32> to vector<4x256xf32>
    %169 = arith.addf %166, %168 : vector<4x256xf32>
    %170 = arith.addf %169, %1 : vector<4x256xf32>
    %c0_80 = arith.constant 0 : index
    %c0_81 = arith.constant 0 : index
    %c0_82 = arith.constant 0 : index
    %171 = vector.load %arg12[%c0_80, %c0_81, %c0_82] : memref<1x4x256xf32, #tpu.memory_space<vmem>>, vector<1x4x256xf32>
    %172 = vector.shape_cast %171 : vector<1x4x256xf32> to vector<4x256xf32>
    %173 = vector.shape_cast %170 : vector<4x256xf32> to vector<1x4x256xf32>
    tpu.vector_store %arg12[%c0_80, %c0_81, %c0_82], %173 {strides = array<i32>} : memref<1x4x256xf32, #tpu.memory_space<vmem>>, vector<1x4x256xf32>,
    return
  }
  func.func @transform_0(%arg0: i32) -> (i32, i32, i32) {
    %c0_i32 = arith.constant 0 : i32
    %c0_i32_0 = arith.constant 0 : i32
    %c0_i32_1 = arith.constant 0 : i32
    return %arg0, %c0_i32, %c0_i32_0 : i32, i32, i32
  }
  func.func @transform_1(%arg0: i32) -> (i32, i32) {
    %c0_i32 = arith.constant 0 : i32
    %c0_i32_0 = arith.constant 0 : i32
    %c0_i32_1 = arith.constant 0 : i32
    return %c0_i32, %c0_i32_0 : i32, i32
  }
  func.func @transform_2(%arg0: i32) -> (i32, i32) {
    %c0_i32 = arith.constant 0 : i32
    %c0_i32_0 = arith.constant 0 : i32
    %c0_i32_1 = arith.constant 0 : i32
    return %c0_i32, %c0_i32_0 : i32, i32
  }
  func.func @transform_3(%arg0: i32) -> (i32, i32, i32) {
    %c0_i32 = arith.constant 0 : i32
    %c0_i32_0 = arith.constant 0 : i32
    %c0_i32_1 = arith.constant 0 : i32
    %c0_i32_2 = arith.constant 0 : i32
    return %c0_i32, %c0_i32_0, %c0_i32_1 : i32, i32, i32
  }
  func.func @transform_4(%arg0: i32) -> (i32, i32) {
    %c0_i32 = arith.constant 0 : i32
    %c0_i32_0 = arith.constant 0 : i32
    %c0_i32_1 = arith.constant 0 : i32
    return %c0_i32, %c0_i32_0 : i32, i32
  }
  func.func @transform_5(%arg0: i32) -> (i32, i32) {
    %c0_i32 = arith.constant 0 : i32
    %c0_i32_0 = arith.constant 0 : i32
    %c0_i32_1 = arith.constant 0 : i32
    return %c0_i32, %c0_i32_0 : i32, i32
  }
  func.func @transform_6(%arg0: i32) -> (i32, i32) {
    %c0_i32 = arith.constant 0 : i32
    %c0_i32_0 = arith.constant 0 : i32
    %c0_i32_1 = arith.constant 0 : i32
    return %c0_i32, %c0_i32_0 : i32, i32
  }
  func.func @transform_7(%arg0: i32) -> (i32, i32) {
    %c0_i32 = arith.constant 0 : i32
    %c0_i32_0 = arith.constant 0 : i32
    %c0_i32_1 = arith.constant 0 : i32
    return %c0_i32, %c0_i32_0 : i32, i32
  }
  func.func @transform_8(%arg0: i32) -> (i32, i32) {
    %c0_i32 = arith.constant 0 : i32
    %c0_i32_0 = arith.constant 0 : i32
    %c0_i32_1 = arith.constant 0 : i32
    return %c0_i32, %c0_i32_0 : i32, i32
  }
  func.func @transform_9(%arg0: i32) -> (i32, i32) {
    %c0_i32 = arith.constant 0 : i32
    %c0_i32_0 = arith.constant 0 : i32
    %c0_i32_1 = arith.constant 0 : i32
    return %c0_i32, %c0_i32_0 : i32, i32
  }
  func.func @transform_10(%arg0: i32) -> (i32, i32) {
    %c0_i32 = arith.constant 0 : i32
    %c0_i32_0 = arith.constant 0 : i32
    %c0_i32_1 = arith.constant 0 : i32
    return %c0_i32, %c0_i32_0 : i32, i32
  }
  func.func @transform_11(%arg0: i32) -> (i32, i32, i32) {
    %c0_i32 = arith.constant 0 : i32
    %c0_i32_0 = arith.constant 0 : i32
    %c0_i32_1 = arith.constant 0 : i32
    return %arg0, %c0_i32, %c0_i32_0 : i32, i32, i32
  }
}

</mosaic_0001>

<llo_original>
// kernel: tpu_custom_call.1
$region0: #{tpu_custom_call.1}
  #allocation0 [shape = 'u32[]', space=smem, size = 0x4, offset = 0x4, fixed_abs, tag = 'smem constant byte address 0x4 - core index']
  #allocation1 [shape = 'u32[72,128]{1,0:T(1,128)}', space=vmem, size = 0x9000, scoped, tag = 'internal scratch']
  #allocation2 [shape = 'f32[1,1]{1,0:T(1,128)S(1)}', space=vmem, size = 0x200, scoped, tag = 'scoped memory for tpu_custom_call.1']
  %s0 = inlined_call_operand.vmem [shape: f32[2,4,256], index: 0, kind: input, shape index: {}]
  %s1 = inlined_call_operand.vmem [shape: bf16[24,4], index: 1, kind: input, shape index: {}]
  %s2 = inlined_call_operand.vmem [shape: f32[24,1], index: 2, kind: input, shape index: {}]
  %s3 = inlined_call_operand.hbm [shape: f32[25,24,256], index: 3, kind: input, shape index: {}]
  %s4 = inlined_call_operand.vmem [shape: f32[24,1], index: 4, kind: input, shape index: {}]
  %s5 = inlined_call_operand.vmem [shape: f32[24,1], index: 5, kind: input, shape index: {}]
  %s6 = inlined_call_operand.<no memory space> [shape: f32[1,1], index: 6, kind: input, shape index: {}]
  %s7 = inlined_call_operand.vmem [shape: f32[24,1], index: 7, kind: input, shape index: {}]
  %s8 = inlined_call_operand.vmem [shape: f32[24,1], index: 8, kind: input, shape index: {}]
  %s9 = inlined_call_operand.vmem [shape: bf16[4,24], index: 9, kind: input, shape index: {}]
  %s10 = inlined_call_operand.vmem [shape: f32[4,1], index: 10, kind: input, shape index: {}]
  %s11 = inlined_call_operand.hbm [shape: f32[2,4,256], index: 11, kind: output, shape index: {}]
  %s12 = sld [smem:[#allocation0]]
  $region81: #{tpu_custom_call.1} parent=0
    _
  %s14 = ssub.s32 1, %s12
  %s15 = scalar_select 0, %s14, %s12
  %v16 = vstv %s6
  %17 = vst [vmem:[#allocation2] sm:$0x1] %v16
  $region1: #{tpu_custom_call.1} parent=0
    #allocation3 [shape = 'u8[614400]{0}', space=vmem, size = 0x96000, scoped, tag = 'input window, operand 3, single buffered']
    #allocation4 [shape = 's32[2]{0}', space=sflag, size = 0x8, scoped, tag = 'scoped memory for tpu_custom_call.1']
    #allocation5 [shape = 's32[2]{0}', space=sflag, size = 0x8, scoped, tag = 'scoped memory for tpu_custom_call.1']
    #allocation6 [shape = 'u8[8192]{0}', space=vmem, size = 0x2000, scoped, tag = 'output window, operand 0']
    %18 = vsyncpa [#allocation4], 0
    %19 = vsyncpa [#allocation5], 0
    %s20 = scalar_lea.sflag [#allocation5], 1
    %21 = vsyncpa %s20, 0
    loop: start=0, step=1, limit=4
    $region2: #{tpu_custom_call.1} parent=1 // loop_pre_header
      _
    $region3: #{tpu_custom_call.1} parent=1 // loop_header
      %s23 = sphi 0, %s27
      %p24 = scmp.ge.s32.totalorder %s23, 4
      %s33 = sphi 0, %s35
      %s36 = sphi 0, %s33
      %s37 = sphi 0, %s36
      %s53 = sphi 0, %s37
      %s57 = sphi 0, %s57
      %s59 = sphi 0, %s57
      %s60 = sphi 0, %s59
      %s74 = sphi 0, %s60
      %s78 = sphi 0, %s78
      %s80 = sphi 0, %s78
      %s81 = sphi 0, %s80
      %s95 = sphi 0, %s81
      %s99 = sphi 0, %s99
      %s101 = sphi 0, %s99
      %s102 = sphi 0, %s101
      %s116 = sphi 0, %s102
      %s120 = sphi 0, %s120
      %s122 = sphi 0, %s120
      %s123 = sphi 0, %s122
      %s137 = sphi 0, %s123
      %s141 = sphi 0, %s141
      %s143 = sphi 0, %s141
      %s144 = sphi 0, %s143
      %s158 = sphi 0, %s144
      %s162 = sphi 0, %s162
      %s164 = sphi 0, %s162
      %s165 = sphi 0, %s164
      %s179 = sphi 0, %s165
      %s183 = sphi 0, %s183
      %s185 = sphi 0, %s183
      %s186 = sphi 0, %s185
      %s200 = sphi 0, %s186
      %s204 = sphi 0, %s204
      %s206 = sphi 0, %s204
      %s207 = sphi 0, %s206
      %s221 = sphi 0, %s207
      %s225 = sphi 0, %s225
      %s227 = sphi 0, %s225
      %s228 = sphi 0, %s227
      %s242 = sphi 0, %s228
      %s246 = sphi 0, %s246
      %s248 = sphi 0, %s246
      %s249 = sphi 0, %s248
      %s263 = sphi 0, %s249
      %s269 = sphi 0, %s271
      %s272 = sphi 0, %s269
      %s273 = sphi 0, %s272
      %s289 = sphi 0, %s273
    $region4: #{tpu_custom_call.1} parent=1 // loop_header_branch
      %26 = sbr.rel (%p24) target = $region8
    $region5: #{tpu_custom_call.1} parent=1 // loop_body
      %s28 = ssub.s32 %s23, 1
      %s29 = ssub.s32 %s23, 2
      %s30 = sadd.s32 %s23, 1
      %s31 = ssub.s32 %s23, %s30
      %p32 = scmp.eq.s32.totalorder %s31, 0
      %s34 = sadd.s32 %s33, 1
      %s35 = scalar_select %p32, %s33, %s34
      %p38 = pneg %p32
      %p39 = scmp.eq.s32.totalorder %s23, 1
      %p40 = por %p38, %p39
      %p41 = scmp.ne.s32.totalorder %s33, %s36
      %p42 = scmp.eq.s32.totalorder %s23, 0
      %p43 = por %p41, %p42
      %p44 = scmp.ne.s32.totalorder %s33, %s36
      %p45 = scmp.eq.s32.totalorder %s28, 1
      %p46 = por %p44, %p45
      %p47 = scmp.ne.s32.totalorder %s36, %s37
      %p48 = scmp.eq.s32.totalorder %s28, 0
      %p49 = por %p47, %p48
      %p50 = scmp.ne.s32.totalorder %s36, %s37
      %p51 = scmp.eq.s32.totalorder %s29, 1
      %p52 = por %p50, %p51
      %p54 = scmp.ne.s32.totalorder %s37, %s53
      %p55 = scmp.eq.s32.totalorder %s29, 0
      %p56 = por %p54, %p55
      %s58 = sadd.s32 %s57, 1
      %p61 = scmp.eq.s32.totalorder %s23, 1
      %p62 = scmp.ne.s32.totalorder %s57, %s59
      %p63 = scmp.eq.s32.totalorder %s23, 0
      %p64 = por %p62, %p63
      %p65 = scmp.ne.s32.totalorder %s57, %s59
      %p66 = scmp.eq.s32.totalorder %s28, 1
      %p67 = por %p65, %p66
      %p68 = scmp.ne.s32.totalorder %s59, %s60
      %p69 = scmp.eq.s32.totalorder %s28, 0
      %p70 = por %p68, %p69
      %p71 = scmp.ne.s32.totalorder %s59, %s60
      %p72 = scmp.eq.s32.totalorder %s29, 1
      %p73 = por %p71, %p72
      %p75 = scmp.ne.s32.totalorder %s60, %s74
      %p76 = scmp.eq.s32.totalorder %s29, 0
      %p77 = por %p75, %p76
      %s79 = sadd.s32 %s78, 1
      %p82 = scmp.eq.s32.totalorder %s23, 1
      %p83 = scmp.ne.s32.totalorder %s78, %s80
      %p84 = scmp.eq.s32.totalorder %s23, 0
      %p85 = por %p83, %p84
      %p86 = scmp.ne.s32.totalorder %s78, %s80
      %p87 = scmp.eq.s32.totalorder %s28, 1
      %p88 = por %p86, %p87
      %p89 = scmp.ne.s32.totalorder %s80, %s81
      %p90 = scmp.eq.s32.totalorder %s28, 0
      %p91 = por %p89, %p90
      %p92 = scmp.ne.s32.totalorder %s80, %s81
      %p93 = scmp.eq.s32.totalorder %s29, 1
      %p94 = por %p92, %p93
      %p96 = scmp.ne.s32.totalorder %s81, %s95
      %p97 = scmp.eq.s32.totalorder %s29, 0
      %p98 = por %p96, %p97
      %s100 = sadd.s32 %s99, 1
      %p103 = scmp.eq.s32.totalorder %s23, 1
      %p104 = scmp.ne.s32.totalorder %s99, %s101
      %p105 = scmp.eq.s32.totalorder %s23, 0
      %p106 = por %p104, %p105
      %p107 = scmp.ne.s32.totalorder %s99, %s101
      %p108 = scmp.eq.s32.totalorder %s28, 1
      %p109 = por %p107, %p108
      %p110 = scmp.ne.s32.totalorder %s101, %s102
      %p111 = scmp.eq.s32.totalorder %s28, 0
      %p112 = por %p110, %p111
      %p113 = scmp.ne.s32.totalorder %s101, %s102
      %p114 = scmp.eq.s32.totalorder %s29, 1
      %p115 = por %p113, %p114
      %p117 = scmp.ne.s32.totalorder %s102, %s116
      %p118 = scmp.eq.s32.totalorder %s29, 0
      %p119 = por %p117, %p118
      %s121 = sadd.s32 %s120, 1
      %p124 = scmp.eq.s32.totalorder %s23, 1
      %p125 = scmp.ne.s32.totalorder %s120, %s122
      %p126 = scmp.eq.s32.totalorder %s23, 0
      %p127 = por %p125, %p126
      %p128 = scmp.ne.s32.totalorder %s120, %s122
      %p129 = scmp.eq.s32.totalorder %s28, 1
      %p130 = por %p128, %p129
      %p131 = scmp.ne.s32.totalorder %s122, %s123
      %p132 = scmp.eq.s32.totalorder %s28, 0
      %p133 = por %p131, %p132
      %p134 = scmp.ne.s32.totalorder %s122, %s123
      %p135 = scmp.eq.s32.totalorder %s29, 1
      %p136 = por %p134, %p135
      %p138 = scmp.ne.s32.totalorder %s123, %s137
      %p139 = scmp.eq.s32.totalorder %s29, 0
      %p140 = por %p138, %p139
      %s142 = sadd.s32 %s141, 1
      %p145 = scmp.eq.s32.totalorder %s23, 1
      %p146 = scmp.ne.s32.totalorder %s141, %s143
      %p147 = scmp.eq.s32.totalorder %s23, 0
      %p148 = por %p146, %p147
      %p149 = scmp.ne.s32.totalorder %s141, %s143
      %p150 = scmp.eq.s32.totalorder %s28, 1
      %p151 = por %p149, %p150
      %p152 = scmp.ne.s32.totalorder %s143, %s144
      %p153 = scmp.eq.s32.totalorder %s28, 0
      %p154 = por %p152, %p153
      %p155 = scmp.ne.s32.totalorder %s143, %s144
      %p156 = scmp.eq.s32.totalorder %s29, 1
      %p157 = por %p155, %p156
      %p159 = scmp.ne.s32.totalorder %s144, %s158
      %p160 = scmp.eq.s32.totalorder %s29, 0
      %p161 = por %p159, %p160
      %s163 = sadd.s32 %s162, 1
      %p166 = scmp.eq.s32.totalorder %s23, 1
      %p167 = scmp.ne.s32.totalorder %s162, %s164
      %p168 = scmp.eq.s32.totalorder %s23, 0
      %p169 = por %p167, %p168
      %p170 = scmp.ne.s32.totalorder %s162, %s164
      %p171 = scmp.eq.s32.totalorder %s28, 1
      %p172 = por %p170, %p171
      %p173 = scmp.ne.s32.totalorder %s164, %s165
      %p174 = scmp.eq.s32.totalorder %s28, 0
      %p175 = por %p173, %p174
      %p176 = scmp.ne.s32.totalorder %s164, %s165
      %p177 = scmp.eq.s32.totalorder %s29, 1
      %p178 = por %p176, %p177
      %p180 = scmp.ne.s32.totalorder %s165, %s179
      %p181 = scmp.eq.s32.totalorder %s29, 0
      %p182 = por %p180, %p181
      %s184 = sadd.s32 %s183, 1
      %p187 = scmp.eq.s32.totalorder %s23, 1
      %p188 = scmp.ne.s32.totalorder %s183, %s185
      %p189 = scmp.eq.s32.totalorder %s23, 0
      %p190 = por %p188, %p189
      %p191 = scmp.ne.s32.totalorder %s183, %s185
      %p192 = scmp.eq.s32.totalorder %s28, 1
      %p193 = por %p191, %p192
      %p194 = scmp.ne.s32.totalorder %s185, %s186
      %p195 = scmp.eq.s32.totalorder %s28, 0
      %p196 = por %p194, %p195
      %p197 = scmp.ne.s32.totalorder %s185, %s186
      %p198 = scmp.eq.s32.totalorder %s29, 1
      %p199 = por %p197, %p198
      %p201 = scmp.ne.s32.totalorder %s186, %s200
      %p202 = scmp.eq.s32.totalorder %s29, 0
      %p203 = por %p201, %p202
      %s205 = sadd.s32 %s204, 1
      %p208 = scmp.eq.s32.totalorder %s23, 1
      %p209 = scmp.ne.s32.totalorder %s204, %s206
      %p210 = scmp.eq.s32.totalorder %s23, 0
      %p211 = por %p209, %p210
      %p212 = scmp.ne.s32.totalorder %s204, %s206
      %p213 = scmp.eq.s32.totalorder %s28, 1
      %p214 = por %p212, %p213
      %p215 = scmp.ne.s32.totalorder %s206, %s207
      %p216 = scmp.eq.s32.totalorder %s28, 0
      %p217 = por %p215, %p216
      %p218 = scmp.ne.s32.totalorder %s206, %s207
      %p219 = scmp.eq.s32.totalorder %s29, 1
      %p220 = por %p218, %p219
      %p222 = scmp.ne.s32.totalorder %s207, %s221
      %p223 = scmp.eq.s32.totalorder %s29, 0
      %p224 = por %p222, %p223
      %s226 = sadd.s32 %s225, 1
      %p229 = scmp.eq.s32.totalorder %s23, 1
      %p230 = scmp.ne.s32.totalorder %s225, %s227
      %p231 = scmp.eq.s32.totalorder %s23, 0
      %p232 = por %p230, %p231
      %p233 = scmp.ne.s32.totalorder %s225, %s227
      %p234 = scmp.eq.s32.totalorder %s28, 1
      %p235 = por %p233, %p234
      %p236 = scmp.ne.s32.totalorder %s227, %s228
      %p237 = scmp.eq.s32.totalorder %s28, 0
      %p238 = por %p236, %p237
      %p239 = scmp.ne.s32.totalorder %s227, %s228
      %p240 = scmp.eq.s32.totalorder %s29, 1
      %p241 = por %p239, %p240
      %p243 = scmp.ne.s32.totalorder %s228, %s242
      %p244 = scmp.eq.s32.totalorder %s29, 0
      %p245 = por %p243, %p244
      %s247 = sadd.s32 %s246, 1
      %p250 = scmp.eq.s32.totalorder %s23, 1
      %p251 = scmp.ne.s32.totalorder %s246, %s248
      %p252 = scmp.eq.s32.totalorder %s23, 0
      %p253 = por %p251, %p252
      %p254 = scmp.ne.s32.totalorder %s246, %s248
      %p255 = scmp.eq.s32.totalorder %s28, 1
      %p256 = por %p254, %p255
      %p257 = scmp.ne.s32.totalorder %s248, %s249
      %p258 = scmp.eq.s32.totalorder %s28, 0
      %p259 = por %p257, %p258
      %p260 = scmp.ne.s32.totalorder %s248, %s249
      %p261 = scmp.eq.s32.totalorder %s29, 1
      %p262 = por %p260, %p261
      %p264 = scmp.ne.s32.totalorder %s249, %s263
      %p265 = scmp.eq.s32.totalorder %s29, 0
      %p266 = por %p264, %p265
      %s267 = ssub.s32 %s23, %s30
      %p268 = scmp.eq.s32.totalorder %s267, 0
      %s270 = sadd.s32 %s269, 1
      %s271 = scalar_select %p268, %s269, %s270
      %p274 = pneg %p268
      %p275 = scmp.eq.s32.totalorder %s23, 1
      %p276 = por %p274, %p275
      %p277 = scmp.ne.s32.totalorder %s269, %s272
      %p278 = scmp.eq.s32.totalorder %s23, 0
      %p279 = por %p277, %p278
      %p280 = scmp.ne.s32.totalorder %s269, %s272
      %p281 = scmp.eq.s32.totalorder %s28, 1
      %p282 = por %p280, %p281
      %p283 = scmp.ne.s32.totalorder %s272, %s273
      %p284 = scmp.eq.s32.totalorder %s28, 0
      %p285 = por %p283, %p284
      %p286 = scmp.ne.s32.totalorder %s272, %s273
      %p287 = scmp.eq.s32.totalorder %s29, 1
      %p288 = por %p286, %p287
      %p290 = scmp.ne.s32.totalorder %s273, %s289
      %p291 = scmp.eq.s32.totalorder %s29, 0
      %p292 = por %p290, %p291
      %p293 = scmp.le.s32.totalorder 1, %s23
      %p294 = scmp.lt.s32.totalorder %s23, 3
      %p295 = pnand %p293, %p294
      %p296 = pneg %p295
      // Predicated region
      $region9: #{tpu_custom_call.1} parent=5 // pred_check
        _
      $region10: #{tpu_custom_call.1} parent=5 // pred_check_branch
        %298 = sbr.rel (%p295) target = $region12
      $region11: #{tpu_custom_call.1} parent=5 // pred_region
        %s299 = ssub.s32 %s23, 1
        // Predicated region
        $region13: #{tpu_custom_call.1} parent=11 // pred_check
          %p300 = pneg %p70
        $region14: #{tpu_custom_call.1} parent=11 // pred_check_branch
          %302 = sbr.rel (%p300) target = $region16
        $region15: #{tpu_custom_call.1} parent=11 // pred_region
          _
        $region16: #{tpu_custom_call.1} parent=11 // pred_fallthru
          _
        // Predicated region
        $region17: #{tpu_custom_call.1} parent=11 // pred_check
          %p303 = pneg %p91
        $region18: #{tpu_custom_call.1} parent=11 // pred_check_branch
          %305 = sbr.rel (%p303) target = $region20
        $region19: #{tpu_custom_call.1} parent=11 // pred_region
          _
        $region20: #{tpu_custom_call.1} parent=11 // pred_fallthru
          _
        // Predicated region
        $region21: #{tpu_custom_call.1} parent=11 // pred_check
          %p306 = pneg %p112
        $region22: #{tpu_custom_call.1} parent=11 // pred_check_branch
          %308 = sbr.rel (%p306) target = $region24
        $region23: #{tpu_custom_call.1} parent=11 // pred_region
          %310 = vsyncadd [#allocation4], 0
          %s311 = sshll.u32 %s3, 4
          %s312 = int_to_ptr.hbm [resolvable:$true] %s311
          %s313 = sshll.u32 [#allocation3], 4
          %s314 = int_to_ptr.vmem [resolvable:$true] %s313
          %319 = dma.hbm_to_vmem [thread:$0]  %s312, 19200, %s314, [#allocation4], 256, 256, 16
        $region24: #{tpu_custom_call.1} parent=11 // pred_fallthru
          _
        // Predicated region
        $region25: #{tpu_custom_call.1} parent=11 // pred_check
          %p320 = pneg %p133
        $region26: #{tpu_custom_call.1} parent=11 // pred_check_branch
          %322 = sbr.rel (%p320) target = $region28
        $region27: #{tpu_custom_call.1} parent=11 // pred_region
          _
        $region28: #{tpu_custom_call.1} parent=11 // pred_fallthru
          _
        // Predicated region
        $region29: #{tpu_custom_call.1} parent=11 // pred_check
          %p323 = pneg %p154
        $region30: #{tpu_custom_call.1} parent=11 // pred_check_branch
          %325 = sbr.rel (%p323) target = $region32
        $region31: #{tpu_custom_call.1} parent=11 // pred_region
          _
        $region32: #{tpu_custom_call.1} parent=11 // pred_fallthru
          _
        // Predicated region
        $region33: #{tpu_custom_call.1} parent=11 // pred_check
          %p326 = pneg %p175
        $region34: #{tpu_custom_call.1} parent=11 // pred_check_branch
          %328 = sbr.rel (%p326) target = $region36
        $region35: #{tpu_custom_call.1} parent=11 // pred_region
          _
        $region36: #{tpu_custom_call.1} parent=11 // pred_fallthru
          _
        // Predicated region
        $region37: #{tpu_custom_call.1} parent=11 // pred_check
          %p329 = pneg %p196
        $region38: #{tpu_custom_call.1} parent=11 // pred_check_branch
          %331 = sbr.rel (%p329) target = $region40
        $region39: #{tpu_custom_call.1} parent=11 // pred_region
          _
        $region40: #{tpu_custom_call.1} parent=11 // pred_fallthru
          _
        // Predicated region
        $region41: #{tpu_custom_call.1} parent=11 // pred_check
          %p332 = pneg %p217
        $region42: #{tpu_custom_call.1} parent=11 // pred_check_branch
          %334 = sbr.rel (%p332) target = $region44
        $region43: #{tpu_custom_call.1} parent=11 // pred_region
          _
        $region44: #{tpu_custom_call.1} parent=11 // pred_fallthru
          _
        // Predicated region
        $region45: #{tpu_custom_call.1} parent=11 // pred_check
          %p335 = pneg %p238
        $region46: #{tpu_custom_call.1} parent=11 // pred_check_branch
          %337 = sbr.rel (%p335) target = $region48
        $region47: #{tpu_custom_call.1} parent=11 // pred_region
          _
        $region48: #{tpu_custom_call.1} parent=11 // pred_fallthru
          _
        // Predicated region
        $region49: #{tpu_custom_call.1} parent=11 // pred_check
          %p338 = pneg %p259
        $region50: #{tpu_custom_call.1} parent=11 // pred_check_branch
          %340 = sbr.rel (%p338) target = $region52
        $region51: #{tpu_custom_call.1} parent=11 // pred_region
          _
        $region52: #{tpu_custom_call.1} parent=11 // pred_fallthru
          _
      $region12: #{tpu_custom_call.1} parent=5 // pred_fallthru
        _
      %p341 = scmp.lt.s32.totalorder %s23, 2
      // Predicated region
      $region53: #{tpu_custom_call.1} parent=5 // pred_check
        %p342 = pneg %p341
      $region54: #{tpu_custom_call.1} parent=5 // pred_check_branch
        %344 = sbr.rel (%p342) target = $region56
      $region55: #{tpu_custom_call.1} parent=5 // pred_region
        // Predicated region
        $region57: #{tpu_custom_call.1} parent=55 // pred_check
          %p345 = pneg %p43
        $region58: #{tpu_custom_call.1} parent=55 // pred_check_branch
          %347 = sbr.rel (%p345) target = $region60
        $region59: #{tpu_custom_call.1} parent=55 // pred_region
          %p348 = scmp.lt.s32.totalorder %s23, 1
          %s349 = scalar_select %p348, %s23, 1
          %s350 = smul.addr %s349, 2
          %s351 = smul.addr %s350, 4
          %s352 = scalar_lea.vmem %s0, %s351
        $region60: #{tpu_custom_call.1} parent=55 // pred_fallthru
          _
      $region56: #{tpu_custom_call.1} parent=5 // pred_fallthru
        _
      %p353 = scmp.le.s32.totalorder 1, %s23
      %p354 = scmp.lt.s32.totalorder %s23, 3
      %p355 = pnand %p353, %p354
      %p356 = pneg %p355
      // Predicated region
      $region61: #{tpu_custom_call.1} parent=5 // pred_check
        _
      $region62: #{tpu_custom_call.1} parent=5 // pred_check_branch
        %358 = sbr.rel (%p355) target = $region64
      $region63: #{tpu_custom_call.1} parent=5 // pred_region
        %s359 = ssub.s32 %s23, 1
        // Predicated region
        $region65: #{tpu_custom_call.1} parent=63 // pred_check
          %p360 = pneg %p112
        $region66: #{tpu_custom_call.1} parent=63 // pred_check_branch
          %362 = sbr.rel (%p360) target = $region68
        $region67: #{tpu_custom_call.1} parent=63 // pred_region
          %364 = dma.done [#allocation4], 19200
        $region68: #{tpu_custom_call.1} parent=63 // pred_fallthru
          _
        %p365 = scmp.lt.s32.totalorder %s28, 1
        %s366 = scalar_select %p365, %s28, 1
        %s367 = smul.addr %s366, 2
        %s368 = smul.addr %s367, 4
        %s369 = scalar_lea.vmem %s0, %s368
        %p370 = pneg %p49
        %p371 = pneg %p46
        %p372 = pneg %p70
        %p373 = pneg %p67
        %p374 = pneg %p91
        %p375 = pneg %p88
        %p376 = pneg %p112
        %p377 = pneg %p109
        %p378 = pneg %p133
        %p379 = pneg %p130
        %p380 = pneg %p154
        %p381 = pneg %p151
        %p382 = pneg %p175
        %p383 = pneg %p172
        %p384 = pneg %p196
        %p385 = pneg %p193
        %p386 = pneg %p217
        %p387 = pneg %p214
        %p388 = pneg %p238
        %p389 = pneg %p235
        %p390 = pneg %p259
        %p391 = pneg %p256
        %p392 = pneg %p285
        %p393 = pneg %p282
        %s394 = sand.u32 %s272, 1
        %s395 = scalar_lea.sflag [#allocation5], %s394
        %s396 = sand.u32 %s272, 1
        %s397 = smul.addr %s396, 8
        %s398 = scalar_lea.vmem [#allocation6], %s397
        %p399 = scmp.lt.s32.totalorder %s28, 1
        %s400 = scalar_select %p399, %s28, 1
        %s401 = smul.addr %s400, 2
        %s402 = smul.addr %s401, 4
        %s403 = scalar_lea.vmem %s0, %s402
        %v405 = vld [vmem:[%s403] sm:$0xff]
        %v406 = vld [vmem:[%s1] sm:$0xf]
        %v407 = vld [vmem:[%s1 + $0x4] sm:$0xf]
        %v408 = vld [vmem:[%s1 + $0x8] sm:$0xf]
        %410 = vst [vmem:[#allocation1] ss:$2 sm:$0xff] %v405
        %v411 = vld.sshfl [vmem:[#allocation1] sm:$0xff pattern:$0x75316420]
        %v412 = vld.sshfl [vmem:[#allocation1 + $0x8] sm:$0xff pattern:$0x75316420]
        %v415 = vpack.c.bf16 %v411, %v411
        %v416 = vpack.c.bf16 %v412, %v412
        %v417 = vld [vmem:[%s2] sm:$0xff]
        %v418 = vld [vmem:[%s2 + $0x8] sm:$0xff]
        %v419 = vld [vmem:[%s2 + $0x10] sm:$0xff]
        %421 = vset.pattern.permute.xlu0 0
        %422 = vperm.xlu0 %421, %v417
        %v423 = vpop.permute.xlu0 %422
        %426 = vset.pattern.permute.xlu0 0
        %427 = vperm.xlu0 %426, %v418
        %v428 = vpop.permute.xlu0 %427
        %431 = vset.pattern.permute.xlu0 0
        %432 = vperm.xlu0 %431, %v419
        %v433 = vpop.permute.xlu0 %432
        %v438 = vunpack.c.l.b16 %v406
        %v439 = vunpack.c.l.b16 %v407
        %v440 = vunpack.c.l.b16 %v408
        %v441 = vpack.c.b16 %v439, %v438
        %v442 = vpack.c.b16 %v440, %v440
        %vm443 = vcmask 31744
        %v445 = vsel %vm443, %v441, 0
        %v448 = vsel %vm443, %v442, 0
        %vm450 = vcmask 1041408
        %v452 = vsel %vm450, %v415, 0
        %v455 = vsel %vm450, %v416, 0
        %457 = vmatpush.bf16.msra.mxu0 0
        %458 = vmatpush.bf16.msra.mxu0 0
        %459 = vmatpush.bf16.msra.mxu0 0
        %460 = vmatpush.bf16.msra.mxu0 0
        %461 = vmatpush.bf16.msra.mxu0 0
        %462 = vmatpush.bf16.msra.mxu0 0
        %463 = vmatpush.bf16.msra.mxu0 0
        %464 = vmatpush.bf16.msra.mxu0 %v452
        %465 = vmatmul.bf16.gmra.mxu0 %v445
        %v466 = vpop.f32.mrf.mxu0
        %v467 = vadd.f32 %v423, %v466
        %v468 = vpop.f32.mrf.mxu0
        %v469 = vadd.f32 %v428, %v468
        %470 = vmatmul.bf16.gmra.mxu0 %v448
        %v471 = vpop.f32.mrf.mxu0
        %v472 = vadd.f32 %v433, %v471
        %v473 = vpop.f32.mrf.mxu0
        %474 = vdwg.mxu0
        %475 = vmatpush.bf16.msra.mxu0 0
        %476 = vmatpush.bf16.msra.mxu0 0
        %477 = vmatpush.bf16.msra.mxu0 0
        %478 = vmatpush.bf16.msra.mxu0 0
        %479 = vmatpush.bf16.msra.mxu0 0
        %480 = vmatpush.bf16.msra.mxu0 0
        %481 = vmatpush.bf16.msra.mxu0 0
        %482 = vmatpush.bf16.msra.mxu0 %v455
        %483 = vmatmul.bf16.gmra.mxu0 %v445
        %v484 = vpop.f32.mrf.mxu0
        %v485 = vadd.f32 %v423, %v484
        %v486 = vpop.f32.mrf.mxu0
        %v487 = vadd.f32 %v428, %v486
        %488 = vmatmul.bf16.gmra.mxu0 %v448
        %v489 = vpop.f32.mrf.mxu0
        %v490 = vadd.f32 %v433, %v489
        %v491 = vpop.f32.mrf.mxu0
        %492 = vdwg.mxu0
        %v493 = vmax.f32 %v467, 0.0
        %v494 = vmax.f32 %v485, 0.0
        %v495 = vmax.f32 %v469, 0.0
        %v496 = vmax.f32 %v487, 0.0
        %v497 = vmax.f32 %v472, 0.0
        %v498 = vmax.f32 %v490, 0.0
        %s499 = scalar_lea.vmem [#allocation3], 576
        %v500 = vld [vmem:[%s499] sm:$0xff]
        %v501 = vld [vmem:[%s499 + $0x8] sm:$0xff]
        %v502 = vld [vmem:[%s499 + $0x10] sm:$0xff]
        %v503 = vld [vmem:[%s499 + $0x18] sm:$0xff]
        %v504 = vld [vmem:[%s499 + $0x20] sm:$0xff]
        %v505 = vld [vmem:[%s499 + $0x28] sm:$0xff]
        %v506 = vmul.f32 %v493, %v500
        %v507 = vmul.f32 %v494, %v501
        %v508 = vmul.f32 %v495, %v502
        %v509 = vmul.f32 %v496, %v503
        %v510 = vmul.f32 %v497, %v504
        %v511 = vmul.f32 %v498, %v505
        %512 = vrot.lane.b32.xlu0 %v493, 34
        %v513 = vpop.permute.xlu0 %512
        %514 = vrot.lane.b32.xlu0 %v495, 34
        %v515 = vpop.permute.xlu0 %514
        %516 = vrot.lane.b32.xlu0 %v497, 34
        %v517 = vpop.permute.xlu0 %516
        %518 = vrot.lane.b32.xlu0 %v494, 34
        %v519 = vpop.permute.xlu0 %518
        %520 = vrot.lane.b32.xlu0 %v496, 34
        %v521 = vpop.permute.xlu0 %520
        %522 = vrot.lane.b32.xlu0 %v498, 34
        %v523 = vpop.permute.xlu0 %522
        %v524 = vlaneseq
        %v525 = vand.u32 %v524, 127
        %vm526 = vcmp.lt.s32.totalorder %v525, 34
        %v527 = vsel %vm526, %v513, %v519
        %v528 = vsel %vm526, %v515, %v521
        %v529 = vsel %vm526, %v517, %v523
        %v530 = vsel %vm526, %v519, %v513
        %v531 = vsel %vm526, %v521, %v515
        %v532 = vsel %vm526, %v523, %v517
        %v533 = vld [vmem:[#allocation3] sm:$0xff]
        %v534 = vld [vmem:[#allocation3 + $0x8] sm:$0xff]
        %v535 = vld [vmem:[#allocation3 + $0x10] sm:$0xff]
        %v536 = vld [vmem:[#allocation3 + $0x18] sm:$0xff]
        %v537 = vld [vmem:[#allocation3 + $0x20] sm:$0xff]
        %v538 = vld [vmem:[#allocation3 + $0x28] sm:$0xff]
        %v539 = vmul.f32 %v530, %v533
        %v540 = vmul.f32 %v527, %v534
        %v541 = vmul.f32 %v531, %v535
        %v542 = vmul.f32 %v528, %v536
        %v543 = vmul.f32 %v532, %v537
        %v544 = vmul.f32 %v529, %v538
        %v545 = vadd.f32 %v506, %v539
        %v546 = vadd.f32 %v507, %v540
        %v547 = vadd.f32 %v508, %v541
        %v548 = vadd.f32 %v509, %v542
        %v549 = vadd.f32 %v510, %v543
        %v550 = vadd.f32 %v511, %v544
        %551 = vrot.lane.b32.xlu0 %v493, 33
        %v552 = vpop.permute.xlu0 %551
        %553 = vrot.lane.b32.xlu0 %v495, 33
        %v554 = vpop.permute.xlu0 %553
        %555 = vrot.lane.b32.xlu0 %v497, 33
        %v556 = vpop.permute.xlu0 %555
        %557 = vrot.lane.b32.xlu0 %v494, 33
        %v558 = vpop.permute.xlu0 %557
        %559 = vrot.lane.b32.xlu0 %v496, 33
        %v560 = vpop.permute.xlu0 %559
        %561 = vrot.lane.b32.xlu0 %v498, 33
        %v562 = vpop.permute.xlu0 %561
        %vm563 = vcmp.lt.s32.totalorder %v525, 33
        %v564 = vsel %vm563, %v552, %v558
        %v565 = vsel %vm563, %v554, %v560
        %v566 = vsel %vm563, %v556, %v562
        %v567 = vsel %vm563, %v558, %v552
        %v568 = vsel %vm563, %v560, %v554
        %v569 = vsel %vm563, %v562, %v556
        %s570 = scalar_lea.vmem [#allocation3], 48
        %v571 = vld [vmem:[%s570] sm:$0xff]
        %v572 = vld [vmem:[%s570 + $0x8] sm:$0xff]
        %v573 = vld [vmem:[%s570 + $0x10] sm:$0xff]
        %v574 = vld [vmem:[%s570 + $0x18] sm:$0xff]
        %v575 = vld [vmem:[%s570 + $0x20] sm:$0xff]
        %v576 = vld [vmem:[%s570 + $0x28] sm:$0xff]
        %v577 = vmul.f32 %v567, %v571
        %v578 = vmul.f32 %v564, %v572
        %v579 = vmul.f32 %v568, %v573
        %v580 = vmul.f32 %v565, %v574
        %v581 = vmul.f32 %v569, %v575
        %v582 = vmul.f32 %v566, %v576
        %v583 = vadd.f32 %v545, %v577
        %v584 = vadd.f32 %v546, %v578
        %v585 = vadd.f32 %v547, %v579
        %v586 = vadd.f32 %v548, %v580
        %v587 = vadd.f32 %v549, %v581
        %v588 = vadd.f32 %v550, %v582
        %589 = vrot.lane.b32.xlu0 %v493, 32
        %v590 = vpop.permute.xlu0 %589
        %591 = vrot.lane.b32.xlu0 %v495, 32
        %v592 = vpop.permute.xlu0 %591
        %593 = vrot.lane.b32.xlu0 %v497, 32
        %v594 = vpop.permute.xlu0 %593
        %595 = vrot.lane.b32.xlu0 %v494, 32
        %v596 = vpop.permute.xlu0 %595
        %597 = vrot.lane.b32.xlu0 %v496, 32
        %v598 = vpop.permute.xlu0 %597
        %599 = vrot.lane.b32.xlu0 %v498, 32
        %v600 = vpop.permute.xlu0 %599
        %vm601 = vcmp.lt.s32.totalorder %v525, 32
        %v602 = vsel %vm601, %v590, %v596
        %v603 = vsel %vm601, %v592, %v598
        %v604 = vsel %vm601, %v594, %v600
        %v605 = vsel %vm601, %v596, %v590
        %v606 = vsel %vm601, %v598, %v592
        %v607 = vsel %vm601, %v600, %v594
        %s608 = scalar_lea.vmem [#allocation3], 96
        %v609 = vld [vmem:[%s608] sm:$0xff]
        %v610 = vld [vmem:[%s608 + $0x8] sm:$0xff]
        %v611 = vld [vmem:[%s608 + $0x10] sm:$0xff]
        %v612 = vld [vmem:[%s608 + $0x18] sm:$0xff]
        %v613 = vld [vmem:[%s608 + $0x20] sm:$0xff]
        %v614 = vld [vmem:[%s608 + $0x28] sm:$0xff]
        %v615 = vmul.f32 %v605, %v609
        %v616 = vmul.f32 %v602, %v610
        %v617 = vmul.f32 %v606, %v611
        %v618 = vmul.f32 %v603, %v612
        %v619 = vmul.f32 %v607, %v613
        %v620 = vmul.f32 %v604, %v614
        %v621 = vadd.f32 %v583, %v615
        %v622 = vadd.f32 %v584, %v616
        %v623 = vadd.f32 %v585, %v617
        %v624 = vadd.f32 %v586, %v618
        %v625 = vadd.f32 %v587, %v619
        %v626 = vadd.f32 %v588, %v620
        %627 = vrot.lane.b32.xlu0 %v493, 31
        %v628 = vpop.permute.xlu0 %627
        %629 = vrot.lane.b32.xlu0 %v495, 31
        %v630 = vpop.permute.xlu0 %629
        %631 = vrot.lane.b32.xlu0 %v497, 31
        %v632 = vpop.permute.xlu0 %631
        %633 = vrot.lane.b32.xlu0 %v494, 31
        %v634 = vpop.permute.xlu0 %633
        %635 = vrot.lane.b32.xlu0 %v496, 31
        %v636 = vpop.permute.xlu0 %635
        %637 = vrot.lane.b32.xlu0 %v498, 31
        %v638 = vpop.permute.xlu0 %637
        %vm639 = vcmp.lt.s32.totalorder %v525, 31
        %v640 = vsel %vm639, %v628, %v634
        %v641 = vsel %vm639, %v630, %v636
        %v642 = vsel %vm639, %v632, %v638
        %v643 = vsel %vm639, %v634, %v628
        %v644 = vsel %vm639, %v636, %v630
        %v645 = vsel %vm639, %v638, %v632
        %s646 = scalar_lea.vmem [#allocation3], 144
        %v647 = vld [vmem:[%s646] sm:$0xff]
        %v648 = vld [vmem:[%s646 + $0x8] sm:$0xff]
        %v649 = vld [vmem:[%s646 + $0x10] sm:$0xff]
        %v650 = vld [vmem:[%s646 + $0x18] sm:$0xff]
        %v651 = vld [vmem:[%s646 + $0x20] sm:$0xff]
        %v652 = vld [vmem:[%s646 + $0x28] sm:$0xff]
        %v653 = vmul.f32 %v643, %v647
        %v654 = vmul.f32 %v640, %v648
        %v655 = vmul.f32 %v644, %v649
        %v656 = vmul.f32 %v641, %v650
        %v657 = vmul.f32 %v645, %v651
        %v658 = vmul.f32 %v642, %v652
        %v659 = vadd.f32 %v621, %v653
        %v660 = vadd.f32 %v622, %v654
        %v661 = vadd.f32 %v623, %v655
        %v662 = vadd.f32 %v624, %v656
        %v663 = vadd.f32 %v625, %v657
        %v664 = vadd.f32 %v626, %v658
        %665 = vrot.lane.b32.xlu0 %v493, 30
        %v666 = vpop.permute.xlu0 %665
        %667 = vrot.lane.b32.xlu0 %v495, 30
        %v668 = vpop.permute.xlu0 %667
        %669 = vrot.lane.b32.xlu0 %v497, 30
        %v670 = vpop.permute.xlu0 %669
        %671 = vrot.lane.b32.xlu0 %v494, 30
        %v672 = vpop.permute.xlu0 %671
        %673 = vrot.lane.b32.xlu0 %v496, 30
        %v674 = vpop.permute.xlu0 %673
        %675 = vrot.lane.b32.xlu0 %v498, 30
        %v676 = vpop.permute.xlu0 %675
        %vm677 = vcmp.lt.s32.totalorder %v525, 30
        %v678 = vsel %vm677, %v666, %v672
        %v679 = vsel %vm677, %v668, %v674
        %v680 = vsel %vm677, %v670, %v676
        %v681 = vsel %vm677, %v672, %v666
        %v682 = vsel %vm677, %v674, %v668
        %v683 = vsel %vm677, %v676, %v670
        %s684 = scalar_lea.vmem [#allocation3], 192
        %v685 = vld [vmem:[%s684] sm:$0xff]
        %v686 = vld [vmem:[%s684 + $0x8] sm:$0xff]
        %v687 = vld [vmem:[%s684 + $0x10] sm:$0xff]
        %v688 = vld [vmem:[%s684 + $0x18] sm:$0xff]
        %v689 = vld [vmem:[%s684 + $0x20] sm:$0xff]
        %v690 = vld [vmem:[%s684 + $0x28] sm:$0xff]
        %v691 = vmul.f32 %v681, %v685
        %v692 = vmul.f32 %v678, %v686
        %v693 = vmul.f32 %v682, %v687
        %v694 = vmul.f32 %v679, %v688
        %v695 = vmul.f32 %v683, %v689
        %v696 = vmul.f32 %v680, %v690
        %v697 = vadd.f32 %v659, %v691
        %v698 = vadd.f32 %v660, %v692
        %v699 = vadd.f32 %v661, %v693
        %v700 = vadd.f32 %v662, %v694
        %v701 = vadd.f32 %v663, %v695
        %v702 = vadd.f32 %v664, %v696
        %703 = vrot.lane.b32.xlu0 %v493, 18
        %v704 = vpop.permute.xlu0 %703
        %705 = vrot.lane.b32.xlu0 %v495, 18
        %v706 = vpop.permute.xlu0 %705
        %707 = vrot.lane.b32.xlu0 %v497, 18
        %v708 = vpop.permute.xlu0 %707
        %709 = vrot.lane.b32.xlu0 %v494, 18
        %v710 = vpop.permute.xlu0 %709
        %711 = vrot.lane.b32.xlu0 %v496, 18
        %v712 = vpop.permute.xlu0 %711
        %713 = vrot.lane.b32.xlu0 %v498, 18
        %v714 = vpop.permute.xlu0 %713
        %vm715 = vcmp.lt.s32.totalorder %v525, 18
        %v716 = vsel %vm715, %v704, %v710
        %v717 = vsel %vm715, %v706, %v712
        %v718 = vsel %vm715, %v708, %v714
        %v719 = vsel %vm715, %v710, %v704
        %v720 = vsel %vm715, %v712, %v706
        %v721 = vsel %vm715, %v714, %v708
        %s722 = scalar_lea.vmem [#allocation3], 240
        %v723 = vld [vmem:[%s722] sm:$0xff]
        %v724 = vld [vmem:[%s722 + $0x8] sm:$0xff]
        %v725 = vld [vmem:[%s722 + $0x10] sm:$0xff]
        %v726 = vld [vmem:[%s722 + $0x18] sm:$0xff]
        %v727 = vld [vmem:[%s722 + $0x20] sm:$0xff]
        %v728 = vld [vmem:[%s722 + $0x28] sm:$0xff]
        %v729 = vmul.f32 %v719, %v723
        %v730 = vmul.f32 %v716, %v724
        %v731 = vmul.f32 %v720, %v725
        %v732 = vmul.f32 %v717, %v726
        %v733 = vmul.f32 %v721, %v727
        %v734 = vmul.f32 %v718, %v728
        %v735 = vadd.f32 %v697, %v729
        %v736 = vadd.f32 %v698, %v730
        %v737 = vadd.f32 %v699, %v731
        %v738 = vadd.f32 %v700, %v732
        %v739 = vadd.f32 %v701, %v733
        %v740 = vadd.f32 %v702, %v734
        %741 = vrot.lane.b32.xlu0 %v493, 17
        %v742 = vpop.permute.xlu0 %741
        %743 = vrot.lane.b32.xlu0 %v495, 17
        %v744 = vpop.permute.xlu0 %743
        %745 = vrot.lane.b32.xlu0 %v497, 17
        %v746 = vpop.permute.xlu0 %745
        %747 = vrot.lane.b32.xlu0 %v494, 17
        %v748 = vpop.permute.xlu0 %747
        %749 = vrot.lane.b32.xlu0 %v496, 17
        %v750 = vpop.permute.xlu0 %749
        %751 = vrot.lane.b32.xlu0 %v498, 17
        %v752 = vpop.permute.xlu0 %751
        %vm753 = vcmp.lt.s32.totalorder %v525, 17
        %v754 = vsel %vm753, %v742, %v748
        %v755 = vsel %vm753, %v744, %v750
        %v756 = vsel %vm753, %v746, %v752
        %v757 = vsel %vm753, %v748, %v742
        %v758 = vsel %vm753, %v750, %v744
        %v759 = vsel %vm753, %v752, %v746
        %s760 = scalar_lea.vmem [#allocation3], 288
        %v761 = vld [vmem:[%s760] sm:$0xff]
        %v762 = vld [vmem:[%s760 + $0x8] sm:$0xff]
        %v763 = vld [vmem:[%s760 + $0x10] sm:$0xff]
        %v764 = vld [vmem:[%s760 + $0x18] sm:$0xff]
        %v765 = vld [vmem:[%s760 + $0x20] sm:$0xff]
        %v766 = vld [vmem:[%s760 + $0x28] sm:$0xff]
        %v767 = vmul.f32 %v757, %v761
        %v768 = vmul.f32 %v754, %v762
        %v769 = vmul.f32 %v758, %v763
        %v770 = vmul.f32 %v755, %v764
        %v771 = vmul.f32 %v759, %v765
        %v772 = vmul.f32 %v756, %v766
        %v773 = vadd.f32 %v735, %v767
        %v774 = vadd.f32 %v736, %v768
        %v775 = vadd.f32 %v737, %v769
        %v776 = vadd.f32 %v738, %v770
        %v777 = vadd.f32 %v739, %v771
        %v778 = vadd.f32 %v740, %v772
        %779 = vrot.lane.b32.xlu0 %v493, 16
        %v780 = vpop.permute.xlu0 %779
        %781 = vrot.lane.b32.xlu0 %v495, 16
        %v782 = vpop.permute.xlu0 %781
        %783 = vrot.lane.b32.xlu0 %v497, 16
        %v784 = vpop.permute.xlu0 %783
        %785 = vrot.lane.b32.xlu0 %v494, 16
        %v786 = vpop.permute.xlu0 %785
        %787 = vrot.lane.b32.xlu0 %v496, 16
        %v788 = vpop.permute.xlu0 %787
        %789 = vrot.lane.b32.xlu0 %v498, 16
        %v790 = vpop.permute.xlu0 %789
        %vm791 = vcmp.lt.s32.totalorder %v525, 16
        %v792 = vsel %vm791, %v780, %v786
        %v793 = vsel %vm791, %v782, %v788
        %v794 = vsel %vm791, %v784, %v790
        %v795 = vsel %vm791, %v786, %v780
        %v796 = vsel %vm791, %v788, %v782
        %v797 = vsel %vm791, %v790, %v784
        %s798 = scalar_lea.vmem [#allocation3], 336
        %v799 = vld [vmem:[%s798] sm:$0xff]
        %v800 = vld [vmem:[%s798 + $0x8] sm:$0xff]
        %v801 = vld [vmem:[%s798 + $0x10] sm:$0xff]
        %v802 = vld [vmem:[%s798 + $0x18] sm:$0xff]
        %v803 = vld [vmem:[%s798 + $0x20] sm:$0xff]
        %v804 = vld [vmem:[%s798 + $0x28] sm:$0xff]
        %v805 = vmul.f32 %v795, %v799
        %v806 = vmul.f32 %v792, %v800
        %v807 = vmul.f32 %v796, %v801
        %v808 = vmul.f32 %v793, %v802
        %v809 = vmul.f32 %v797, %v803
        %v810 = vmul.f32 %v794, %v804
        %v811 = vadd.f32 %v773, %v805
        %v812 = vadd.f32 %v774, %v806
        %v813 = vadd.f32 %v775, %v807
        %v814 = vadd.f32 %v776, %v808
        %v815 = vadd.f32 %v777, %v809
        %v816 = vadd.f32 %v778, %v810
        %817 = vrot.lane.b32.xlu0 %v493, 15
        %v818 = vpop.permute.xlu0 %817
        %819 = vrot.lane.b32.xlu0 %v495, 15
        %v820 = vpop.permute.xlu0 %819
        %821 = vrot.lane.b32.xlu0 %v497, 15
        %v822 = vpop.permute.xlu0 %821
        %823 = vrot.lane.b32.xlu0 %v494, 15
        %v824 = vpop.permute.xlu0 %823
        %825 = vrot.lane.b32.xlu0 %v496, 15
        %v826 = vpop.permute.xlu0 %825
        %827 = vrot.lane.b32.xlu0 %v498, 15
        %v828 = vpop.permute.xlu0 %827
        %vm829 = vcmp.lt.s32.totalorder %v525, 15
        %v830 = vsel %vm829, %v818, %v824
        %v831 = vsel %vm829, %v820, %v826
        %v832 = vsel %vm829, %v822, %v828
        %v833 = vsel %vm829, %v824, %v818
        %v834 = vsel %vm829, %v826, %v820
        %v835 = vsel %vm829, %v828, %v822
        %s836 = scalar_lea.vmem [#allocation3], 384
        %v837 = vld [vmem:[%s836] sm:$0xff]
        %v838 = vld [vmem:[%s836 + $0x8] sm:$0xff]
        %v839 = vld [vmem:[%s836 + $0x10] sm:$0xff]
        %v840 = vld [vmem:[%s836 + $0x18] sm:$0xff]
        %v841 = vld [vmem:[%s836 + $0x20] sm:$0xff]
        %v842 = vld [vmem:[%s836 + $0x28] sm:$0xff]
        %v843 = vmul.f32 %v833, %v837
        %v844 = vmul.f32 %v830, %v838
        %v845 = vmul.f32 %v834, %v839
        %v846 = vmul.f32 %v831, %v840
        %v847 = vmul.f32 %v835, %v841
        %v848 = vmul.f32 %v832, %v842
        %v849 = vadd.f32 %v811, %v843
        %v850 = vadd.f32 %v812, %v844
        %v851 = vadd.f32 %v813, %v845
        %v852 = vadd.f32 %v814, %v846
        %v853 = vadd.f32 %v815, %v847
        %v854 = vadd.f32 %v816, %v848
        %855 = vrot.lane.b32.xlu0 %v493, 14
        %v856 = vpop.permute.xlu0 %855
        %857 = vrot.lane.b32.xlu0 %v495, 14
        %v858 = vpop.permute.xlu0 %857
        %859 = vrot.lane.b32.xlu0 %v497, 14
        %v860 = vpop.permute.xlu0 %859
        %861 = vrot.lane.b32.xlu0 %v494, 14
        %v862 = vpop.permute.xlu0 %861
        %863 = vrot.lane.b32.xlu0 %v496, 14
        %v864 = vpop.permute.xlu0 %863
        %865 = vrot.lane.b32.xlu0 %v498, 14
        %v866 = vpop.permute.xlu0 %865
        %vm867 = vcmp.lt.s32.totalorder %v525, 14
        %v868 = vsel %vm867, %v856, %v862
        %v869 = vsel %vm867, %v858, %v864
        %v870 = vsel %vm867, %v860, %v866
        %v871 = vsel %vm867, %v862, %v856
        %v872 = vsel %vm867, %v864, %v858
        %v873 = vsel %vm867, %v866, %v860
        %s874 = scalar_lea.vmem [#allocation3], 432
        %v875 = vld [vmem:[%s874] sm:$0xff]
        %v876 = vld [vmem:[%s874 + $0x8] sm:$0xff]
        %v877 = vld [vmem:[%s874 + $0x10] sm:$0xff]
        %v878 = vld [vmem:[%s874 + $0x18] sm:$0xff]
        %v879 = vld [vmem:[%s874 + $0x20] sm:$0xff]
        %v880 = vld [vmem:[%s874 + $0x28] sm:$0xff]
        %v881 = vmul.f32 %v871, %v875
        %v882 = vmul.f32 %v868, %v876
        %v883 = vmul.f32 %v872, %v877
        %v884 = vmul.f32 %v869, %v878
        %v885 = vmul.f32 %v873, %v879
        %v886 = vmul.f32 %v870, %v880
        %v887 = vadd.f32 %v849, %v881
        %v888 = vadd.f32 %v850, %v882
        %v889 = vadd.f32 %v851, %v883
        %v890 = vadd.f32 %v852, %v884
        %v891 = vadd.f32 %v853, %v885
        %v892 = vadd.f32 %v854, %v886
        %893 = vrot.lane.b32.xlu0 %v493, 2
        %v894 = vpop.permute.xlu0 %893
        %895 = vrot.lane.b32.xlu0 %v495, 2
        %v896 = vpop.permute.xlu0 %895
        %897 = vrot.lane.b32.xlu0 %v497, 2
        %v898 = vpop.permute.xlu0 %897
        %899 = vrot.lane.b32.xlu0 %v494, 2
        %v900 = vpop.permute.xlu0 %899
        %901 = vrot.lane.b32.xlu0 %v496, 2
        %v902 = vpop.permute.xlu0 %901
        %903 = vrot.lane.b32.xlu0 %v498, 2
        %v904 = vpop.permute.xlu0 %903
        %vm905 = vcmp.lt.s32.totalorder %v525, 2
        %v906 = vsel %vm905, %v894, %v900
        %v907 = vsel %vm905, %v896, %v902
        %v908 = vsel %vm905, %v898, %v904
        %v909 = vsel %vm905, %v900, %v894
        %v910 = vsel %vm905, %v902, %v896
        %v911 = vsel %vm905, %v904, %v898
        %s912 = scalar_lea.vmem [#allocation3], 480
        %v913 = vld [vmem:[%s912] sm:$0xff]
        %v914 = vld [vmem:[%s912 + $0x8] sm:$0xff]
        %v915 = vld [vmem:[%s912 + $0x10] sm:$0xff]
        %v916 = vld [vmem:[%s912 + $0x18] sm:$0xff]
        %v917 = vld [vmem:[%s912 + $0x20] sm:$0xff]
        %v918 = vld [vmem:[%s912 + $0x28] sm:$0xff]
        %v919 = vmul.f32 %v909, %v913
        %v920 = vmul.f32 %v906, %v914
        %v921 = vmul.f32 %v910, %v915
        %v922 = vmul.f32 %v907, %v916
        %v923 = vmul.f32 %v911, %v917
        %v924 = vmul.f32 %v908, %v918
        %v925 = vadd.f32 %v887, %v919
        %v926 = vadd.f32 %v888, %v920
        %v927 = vadd.f32 %v889, %v921
        %v928 = vadd.f32 %v890, %v922
        %v929 = vadd.f32 %v891, %v923
        %v930 = vadd.f32 %v892, %v924
        %931 = vrot.lane.b32.xlu0 %v493, 1
        %v932 = vpop.permute.xlu0 %931
        %933 = vrot.lane.b32.xlu0 %v495, 1
        %v934 = vpop.permute.xlu0 %933
        %935 = vrot.lane.b32.xlu0 %v497, 1
        %v936 = vpop.permute.xlu0 %935
        %937 = vrot.lane.b32.xlu0 %v494, 1
        %v938 = vpop.permute.xlu0 %937
        %939 = vrot.lane.b32.xlu0 %v496, 1
        %v940 = vpop.permute.xlu0 %939
        %941 = vrot.lane.b32.xlu0 %v498, 1
        %v942 = vpop.permute.xlu0 %941
        %vm943 = vcmp.lt.s32.totalorder %v525, 1
        %v944 = vsel %vm943, %v932, %v938
        %v945 = vsel %vm943, %v934, %v940
        %v946 = vsel %vm943, %v936, %v942
        %v947 = vsel %vm943, %v938, %v932
        %v948 = vsel %vm943, %v940, %v934
        %v949 = vsel %vm943, %v942, %v936
        %s950 = scalar_lea.vmem [#allocation3], 528
        %v951 = vld [vmem:[%s950] sm:$0xff]
        %v952 = vld [vmem:[%s950 + $0x8] sm:$0xff]
        %v953 = vld [vmem:[%s950 + $0x10] sm:$0xff]
        %v954 = vld [vmem:[%s950 + $0x18] sm:$0xff]
        %v955 = vld [vmem:[%s950 + $0x20] sm:$0xff]
        %v956 = vld [vmem:[%s950 + $0x28] sm:$0xff]
        %v957 = vmul.f32 %v947, %v951
        %v958 = vmul.f32 %v944, %v952
        %v959 = vmul.f32 %v948, %v953
        %v960 = vmul.f32 %v945, %v954
        %v961 = vmul.f32 %v949, %v955
        %v962 = vmul.f32 %v946, %v956
        %v963 = vadd.f32 %v925, %v957
        %v964 = vadd.f32 %v926, %v958
        %v965 = vadd.f32 %v927, %v959
        %v966 = vadd.f32 %v928, %v960
        %v967 = vadd.f32 %v929, %v961
        %v968 = vadd.f32 %v930, %v962
        %969 = vrot.lane.b32.xlu0 %v493, 127
        %v970 = vpop.permute.xlu0 %969
        %971 = vrot.lane.b32.xlu0 %v495, 127
        %v972 = vpop.permute.xlu0 %971
        %973 = vrot.lane.b32.xlu0 %v497, 127
        %v974 = vpop.permute.xlu0 %973
        %975 = vrot.lane.b32.xlu0 %v494, 127
        %v976 = vpop.permute.xlu0 %975
        %977 = vrot.lane.b32.xlu0 %v496, 127
        %v978 = vpop.permute.xlu0 %977
        %979 = vrot.lane.b32.xlu0 %v498, 127
        %v980 = vpop.permute.xlu0 %979
        %vm981 = vcmp.lt.s32.totalorder %v525, 127
        %v982 = vsel %vm981, %v970, %v976
        %v983 = vsel %vm981, %v972, %v978
        %v984 = vsel %vm981, %v974, %v980
        %v985 = vsel %vm981, %v976, %v970
        %v986 = vsel %vm981, %v978, %v972
        %v987 = vsel %vm981, %v980, %v974
        %s988 = scalar_lea.vmem [#allocation3], 624
        %v989 = vld [vmem:[%s988] sm:$0xff]
        %v990 = vld [vmem:[%s988 + $0x8] sm:$0xff]
        %v991 = vld [vmem:[%s988 + $0x10] sm:$0xff]
        %v992 = vld [vmem:[%s988 + $0x18] sm:$0xff]
        %v993 = vld [vmem:[%s988 + $0x20] sm:$0xff]
        %v994 = vld [vmem:[%s988 + $0x28] sm:$0xff]
        %v995 = vmul.f32 %v982, %v989
        %v996 = vmul.f32 %v985, %v990
        %v997 = vmul.f32 %v983, %v991
        %v998 = vmul.f32 %v986, %v992
        %v999 = vmul.f32 %v984, %v993
        %v1000 = vmul.f32 %v987, %v994
        %v1001 = vadd.f32 %v963, %v995
        %v1002 = vadd.f32 %v964, %v996
        %v1003 = vadd.f32 %v965, %v997
        %v1004 = vadd.f32 %v966, %v998
        %v1005 = vadd.f32 %v967, %v999
        %v1006 = vadd.f32 %v968, %v1000
        %1007 = vrot.lane.b32.xlu0 %v493, 126
        %v1008 = vpop.permute.xlu0 %1007
        %1009 = vrot.lane.b32.xlu0 %v495, 126
        %v1010 = vpop.permute.xlu0 %1009
        %1011 = vrot.lane.b32.xlu0 %v497, 126
        %v1012 = vpop.permute.xlu0 %1011
        %1013 = vrot.lane.b32.xlu0 %v494, 126
        %v1014 = vpop.permute.xlu0 %1013
        %1015 = vrot.lane.b32.xlu0 %v496, 126
        %v1016 = vpop.permute.xlu0 %1015
        %1017 = vrot.lane.b32.xlu0 %v498, 126
        %v1018 = vpop.permute.xlu0 %1017
        %vm1019 = vcmp.lt.s32.totalorder %v525, 126
        %v1020 = vsel %vm1019, %v1008, %v1014
        %v1021 = vsel %vm1019, %v1010, %v1016
        %v1022 = vsel %vm1019, %v1012, %v1018
        %v1023 = vsel %vm1019, %v1014, %v1008
        %v1024 = vsel %vm1019, %v1016, %v1010
        %v1025 = vsel %vm1019, %v1018, %v1012
        %s1026 = scalar_lea.vmem [#allocation3], 672
        %v1027 = vld [vmem:[%s1026] sm:$0xff]
        %v1028 = vld [vmem:[%s1026 + $0x8] sm:$0xff]
        %v1029 = vld [vmem:[%s1026 + $0x10] sm:$0xff]
        %v1030 = vld [vmem:[%s1026 + $0x18] sm:$0xff]
        %v1031 = vld [vmem:[%s1026 + $0x20] sm:$0xff]
        %v1032 = vld [vmem:[%s1026 + $0x28] sm:$0xff]
        %v1033 = vmul.f32 %v1020, %v1027
        %v1034 = vmul.f32 %v1023, %v1028
        %v1035 = vmul.f32 %v1021, %v1029
        %v1036 = vmul.f32 %v1024, %v1030
        %v1037 = vmul.f32 %v1022, %v1031
        %v1038 = vmul.f32 %v1025, %v1032
        %v1039 = vadd.f32 %v1001, %v1033
        %v1040 = vadd.f32 %v1002, %v1034
        %v1041 = vadd.f32 %v1003, %v1035
        %v1042 = vadd.f32 %v1004, %v1036
        %v1043 = vadd.f32 %v1005, %v1037
        %v1044 = vadd.f32 %v1006, %v1038
        %1045 = vrot.lane.b32.xlu0 %v493, 114
        %v1046 = vpop.permute.xlu0 %1045
        %1047 = vrot.lane.b32.xlu0 %v495, 114
        %v1048 = vpop.permute.xlu0 %1047
        %1049 = vrot.lane.b32.xlu0 %v497, 114
        %v1050 = vpop.permute.xlu0 %1049
        %1051 = vrot.lane.b32.xlu0 %v494, 114
        %v1052 = vpop.permute.xlu0 %1051
        %1053 = vrot.lane.b32.xlu0 %v496, 114
        %v1054 = vpop.permute.xlu0 %1053
        %1055 = vrot.lane.b32.xlu0 %v498, 114
        %v1056 = vpop.permute.xlu0 %1055
        %vm1057 = vcmp.lt.s32.totalorder %v525, 114
        %v1058 = vsel %vm1057, %v1046, %v1052
        %v1059 = vsel %vm1057, %v1048, %v1054
        %v1060 = vsel %vm1057, %v1050, %v1056
        %v1061 = vsel %vm1057, %v1052, %v1046
        %v1062 = vsel %vm1057, %v1054, %v1048
        %v1063 = vsel %vm1057, %v1056, %v1050
        %s1064 = scalar_lea.vmem [#allocation3], 720
        %v1065 = vld [vmem:[%s1064] sm:$0xff]
        %v1066 = vld [vmem:[%s1064 + $0x8] sm:$0xff]
        %v1067 = vld [vmem:[%s1064 + $0x10] sm:$0xff]
        %v1068 = vld [vmem:[%s1064 + $0x18] sm:$0xff]
        %v1069 = vld [vmem:[%s1064 + $0x20] sm:$0xff]
        %v1070 = vld [vmem:[%s1064 + $0x28] sm:$0xff]
        %v1071 = vmul.f32 %v1058, %v1065
        %v1072 = vmul.f32 %v1061, %v1066
        %v1073 = vmul.f32 %v1059, %v1067
        %v1074 = vmul.f32 %v1062, %v1068
        %v1075 = vmul.f32 %v1060, %v1069
        %v1076 = vmul.f32 %v1063, %v1070
        %v1077 = vadd.f32 %v1039, %v1071
        %v1078 = vadd.f32 %v1040, %v1072
        %v1079 = vadd.f32 %v1041, %v1073
        %v1080 = vadd.f32 %v1042, %v1074
        %v1081 = vadd.f32 %v1043, %v1075
        %v1082 = vadd.f32 %v1044, %v1076
        %1083 = vrot.lane.b32.xlu0 %v493, 113
        %v1084 = vpop.permute.xlu0 %1083
        %1085 = vrot.lane.b32.xlu0 %v495, 113
        %v1086 = vpop.permute.xlu0 %1085
        %1087 = vrot.lane.b32.xlu0 %v497, 113
        %v1088 = vpop.permute.xlu0 %1087
        %1089 = vrot.lane.b32.xlu0 %v494, 113
        %v1090 = vpop.permute.xlu0 %1089
        %1091 = vrot.lane.b32.xlu0 %v496, 113
        %v1092 = vpop.permute.xlu0 %1091
        %1093 = vrot.lane.b32.xlu0 %v498, 113
        %v1094 = vpop.permute.xlu0 %1093
        %vm1095 = vcmp.lt.s32.totalorder %v525, 113
        %v1096 = vsel %vm1095, %v1084, %v1090
        %v1097 = vsel %vm1095, %v1086, %v1092
        %v1098 = vsel %vm1095, %v1088, %v1094
        %v1099 = vsel %vm1095, %v1090, %v1084
        %v1100 = vsel %vm1095, %v1092, %v1086
        %v1101 = vsel %vm1095, %v1094, %v1088
        %s1102 = scalar_lea.vmem [#allocation3], 768
        %v1103 = vld [vmem:[%s1102] sm:$0xff]
        %v1104 = vld [vmem:[%s1102 + $0x8] sm:$0xff]
        %v1105 = vld [vmem:[%s1102 + $0x10] sm:$0xff]
        %v1106 = vld [vmem:[%s1102 + $0x18] sm:$0xff]
        %v1107 = vld [vmem:[%s1102 + $0x20] sm:$0xff]
        %v1108 = vld [vmem:[%s1102 + $0x28] sm:$0xff]
        %v1109 = vmul.f32 %v1096, %v1103
        %v1110 = vmul.f32 %v1099, %v1104
        %v1111 = vmul.f32 %v1097, %v1105
        %v1112 = vmul.f32 %v1100, %v1106
        %v1113 = vmul.f32 %v1098, %v1107
        %v1114 = vmul.f32 %v1101, %v1108
        %v1115 = vadd.f32 %v1077, %v1109
        %v1116 = vadd.f32 %v1078, %v1110
        %v1117 = vadd.f32 %v1079, %v1111
        %v1118 = vadd.f32 %v1080, %v1112
        %v1119 = vadd.f32 %v1081, %v1113
        %v1120 = vadd.f32 %v1082, %v1114
        %1121 = vrot.lane.b32.xlu0 %v493, 112
        %v1122 = vpop.permute.xlu0 %1121
        %1123 = vrot.lane.b32.xlu0 %v495, 112
        %v1124 = vpop.permute.xlu0 %1123
        %1125 = vrot.lane.b32.xlu0 %v497, 112
        %v1126 = vpop.permute.xlu0 %1125
        %1127 = vrot.lane.b32.xlu0 %v494, 112
        %v1128 = vpop.permute.xlu0 %1127
        %1129 = vrot.lane.b32.xlu0 %v496, 112
        %v1130 = vpop.permute.xlu0 %1129
        %1131 = vrot.lane.b32.xlu0 %v498, 112
        %v1132 = vpop.permute.xlu0 %1131
        %vm1133 = vcmp.lt.s32.totalorder %v525, 112
        %v1134 = vsel %vm1133, %v1122, %v1128
        %v1135 = vsel %vm1133, %v1124, %v1130
        %v1136 = vsel %vm1133, %v1126, %v1132
        %v1137 = vsel %vm1133, %v1128, %v1122
        %v1138 = vsel %vm1133, %v1130, %v1124
        %v1139 = vsel %vm1133, %v1132, %v1126
        %s1140 = scalar_lea.vmem [#allocation3], 816
        %v1141 = vld [vmem:[%s1140] sm:$0xff]
        %v1142 = vld [vmem:[%s1140 + $0x8] sm:$0xff]
        %v1143 = vld [vmem:[%s1140 + $0x10] sm:$0xff]
        %v1144 = vld [vmem:[%s1140 + $0x18] sm:$0xff]
        %v1145 = vld [vmem:[%s1140 + $0x20] sm:$0xff]
        %v1146 = vld [vmem:[%s1140 + $0x28] sm:$0xff]
        %v1147 = vmul.f32 %v1134, %v1141
        %v1148 = vmul.f32 %v1137, %v1142
        %v1149 = vmul.f32 %v1135, %v1143
        %v1150 = vmul.f32 %v1138, %v1144
        %v1151 = vmul.f32 %v1136, %v1145
        %v1152 = vmul.f32 %v1139, %v1146
        %v1153 = vadd.f32 %v1115, %v1147
        %v1154 = vadd.f32 %v1116, %v1148
        %v1155 = vadd.f32 %v1117, %v1149
        %v1156 = vadd.f32 %v1118, %v1150
        %v1157 = vadd.f32 %v1119, %v1151
        %v1158 = vadd.f32 %v1120, %v1152
        %1159 = vrot.lane.b32.xlu0 %v493, 111
        %v1160 = vpop.permute.xlu0 %1159
        %1161 = vrot.lane.b32.xlu0 %v495, 111
        %v1162 = vpop.permute.xlu0 %1161
        %1163 = vrot.lane.b32.xlu0 %v497, 111
        %v1164 = vpop.permute.xlu0 %1163
        %1165 = vrot.lane.b32.xlu0 %v494, 111
        %v1166 = vpop.permute.xlu0 %1165
        %1167 = vrot.lane.b32.xlu0 %v496, 111
        %v1168 = vpop.permute.xlu0 %1167
        %1169 = vrot.lane.b32.xlu0 %v498, 111
        %v1170 = vpop.permute.xlu0 %1169
        %vm1171 = vcmp.lt.s32.totalorder %v525, 111
        %v1172 = vsel %vm1171, %v1160, %v1166
        %v1173 = vsel %vm1171, %v1162, %v1168
        %v1174 = vsel %vm1171, %v1164, %v1170
        %v1175 = vsel %vm1171, %v1166, %v1160
        %v1176 = vsel %vm1171, %v1168, %v1162
        %v1177 = vsel %vm1171, %v1170, %v1164
        %s1178 = scalar_lea.vmem [#allocation3], 864
        %v1179 = vld [vmem:[%s1178] sm:$0xff]
        %v1180 = vld [vmem:[%s1178 + $0x8] sm:$0xff]
        %v1181 = vld [vmem:[%s1178 + $0x10] sm:$0xff]
        %v1182 = vld [vmem:[%s1178 + $0x18] sm:$0xff]
        %v1183 = vld [vmem:[%s1178 + $0x20] sm:$0xff]
        %v1184 = vld [vmem:[%s1178 + $0x28] sm:$0xff]
        %v1185 = vmul.f32 %v1172, %v1179
        %v1186 = vmul.f32 %v1175, %v1180
        %v1187 = vmul.f32 %v1173, %v1181
        %v1188 = vmul.f32 %v1176, %v1182
        %v1189 = vmul.f32 %v1174, %v1183
        %v1190 = vmul.f32 %v1177, %v1184
        %v1191 = vadd.f32 %v1153, %v1185
        %v1192 = vadd.f32 %v1154, %v1186
        %v1193 = vadd.f32 %v1155, %v1187
        %v1194 = vadd.f32 %v1156, %v1188
        %v1195 = vadd.f32 %v1157, %v1189
        %v1196 = vadd.f32 %v1158, %v1190
        %1197 = vrot.lane.b32.xlu0 %v493, 110
        %v1198 = vpop.permute.xlu0 %1197
        %1199 = vrot.lane.b32.xlu0 %v495, 110
        %v1200 = vpop.permute.xlu0 %1199
        %1201 = vrot.lane.b32.xlu0 %v497, 110
        %v1202 = vpop.permute.xlu0 %1201
        %1203 = vrot.lane.b32.xlu0 %v494, 110
        %v1204 = vpop.permute.xlu0 %1203
        %1205 = vrot.lane.b32.xlu0 %v496, 110
        %v1206 = vpop.permute.xlu0 %1205
        %1207 = vrot.lane.b32.xlu0 %v498, 110
        %v1208 = vpop.permute.xlu0 %1207
        %vm1209 = vcmp.lt.s32.totalorder %v525, 110
        %v1210 = vsel %vm1209, %v1198, %v1204
        %v1211 = vsel %vm1209, %v1200, %v1206
        %v1212 = vsel %vm1209, %v1202, %v1208
        %v1213 = vsel %vm1209, %v1204, %v1198
        %v1214 = vsel %vm1209, %v1206, %v1200
        %v1215 = vsel %vm1209, %v1208, %v1202
        %s1216 = scalar_lea.vmem [#allocation3], 912
        %v1217 = vld [vmem:[%s1216] sm:$0xff]
        %v1218 = vld [vmem:[%s1216 + $0x8] sm:$0xff]
        %v1219 = vld [vmem:[%s1216 + $0x10] sm:$0xff]
        %v1220 = vld [vmem:[%s1216 + $0x18] sm:$0xff]
        %v1221 = vld [vmem:[%s1216 + $0x20] sm:$0xff]
        %v1222 = vld [vmem:[%s1216 + $0x28] sm:$0xff]
        %v1223 = vmul.f32 %v1210, %v1217
        %v1224 = vmul.f32 %v1213, %v1218
        %v1225 = vmul.f32 %v1211, %v1219
        %v1226 = vmul.f32 %v1214, %v1220
        %v1227 = vmul.f32 %v1212, %v1221
        %v1228 = vmul.f32 %v1215, %v1222
        %v1229 = vadd.f32 %v1191, %v1223
        %v1230 = vadd.f32 %v1192, %v1224
        %v1231 = vadd.f32 %v1193, %v1225
        %v1232 = vadd.f32 %v1194, %v1226
        %v1233 = vadd.f32 %v1195, %v1227
        %v1234 = vadd.f32 %v1196, %v1228
        %1235 = vrot.lane.b32.xlu0 %v493, 98
        %v1236 = vpop.permute.xlu0 %1235
        %1237 = vrot.lane.b32.xlu0 %v495, 98
        %v1238 = vpop.permute.xlu0 %1237
        %1239 = vrot.lane.b32.xlu0 %v497, 98
        %v1240 = vpop.permute.xlu0 %1239
        %1241 = vrot.lane.b32.xlu0 %v494, 98
        %v1242 = vpop.permute.xlu0 %1241
        %1243 = vrot.lane.b32.xlu0 %v496, 98
        %v1244 = vpop.permute.xlu0 %1243
        %1245 = vrot.lane.b32.xlu0 %v498, 98
        %v1246 = vpop.permute.xlu0 %1245
        %vm1247 = vcmp.lt.s32.totalorder %v525, 98
        %v1248 = vsel %vm1247, %v1236, %v1242
        %v1249 = vsel %vm1247, %v1238, %v1244
        %v1250 = vsel %vm1247, %v1240, %v1246
        %v1251 = vsel %vm1247, %v1242, %v1236
        %v1252 = vsel %vm1247, %v1244, %v1238
        %v1253 = vsel %vm1247, %v1246, %v1240
        %s1254 = scalar_lea.vmem [#allocation3], 960
        %v1255 = vld [vmem:[%s1254] sm:$0xff]
        %v1256 = vld [vmem:[%s1254 + $0x8] sm:$0xff]
        %v1257 = vld [vmem:[%s1254 + $0x10] sm:$0xff]
        %v1258 = vld [vmem:[%s1254 + $0x18] sm:$0xff]
        %v1259 = vld [vmem:[%s1254 + $0x20] sm:$0xff]
        %v1260 = vld [vmem:[%s1254 + $0x28] sm:$0xff]
        %v1261 = vmul.f32 %v1248, %v1255
        %v1262 = vmul.f32 %v1251, %v1256
        %v1263 = vmul.f32 %v1249, %v1257
        %v1264 = vmul.f32 %v1252, %v1258
        %v1265 = vmul.f32 %v1250, %v1259
        %v1266 = vmul.f32 %v1253, %v1260
        %v1267 = vadd.f32 %v1229, %v1261
        %v1268 = vadd.f32 %v1230, %v1262
        %v1269 = vadd.f32 %v1231, %v1263
        %v1270 = vadd.f32 %v1232, %v1264
        %v1271 = vadd.f32 %v1233, %v1265
        %v1272 = vadd.f32 %v1234, %v1266
        %1273 = vrot.lane.b32.xlu0 %v493, 97
        %v1274 = vpop.permute.xlu0 %1273
        %1275 = vrot.lane.b32.xlu0 %v495, 97
        %v1276 = vpop.permute.xlu0 %1275
        %1277 = vrot.lane.b32.xlu0 %v497, 97
        %v1278 = vpop.permute.xlu0 %1277
        %1279 = vrot.lane.b32.xlu0 %v494, 97
        %v1280 = vpop.permute.xlu0 %1279
        %1281 = vrot.lane.b32.xlu0 %v496, 97
        %v1282 = vpop.permute.xlu0 %1281
        %1283 = vrot.lane.b32.xlu0 %v498, 97
        %v1284 = vpop.permute.xlu0 %1283
        %vm1285 = vcmp.lt.s32.totalorder %v525, 97
        %v1286 = vsel %vm1285, %v1274, %v1280
        %v1287 = vsel %vm1285, %v1276, %v1282
        %v1288 = vsel %vm1285, %v1278, %v1284
        %v1289 = vsel %vm1285, %v1280, %v1274
        %v1290 = vsel %vm1285, %v1282, %v1276
        %v1291 = vsel %vm1285, %v1284, %v1278
        %s1292 = scalar_lea.vmem [#allocation3], 1008
        %v1293 = vld [vmem:[%s1292] sm:$0xff]
        %v1294 = vld [vmem:[%s1292 + $0x8] sm:$0xff]
        %v1295 = vld [vmem:[%s1292 + $0x10] sm:$0xff]
        %v1296 = vld [vmem:[%s1292 + $0x18] sm:$0xff]
        %v1297 = vld [vmem:[%s1292 + $0x20] sm:$0xff]
        %v1298 = vld [vmem:[%s1292 + $0x28] sm:$0xff]
        %v1299 = vmul.f32 %v1286, %v1293
        %v1300 = vmul.f32 %v1289, %v1294
        %v1301 = vmul.f32 %v1287, %v1295
        %v1302 = vmul.f32 %v1290, %v1296
        %v1303 = vmul.f32 %v1288, %v1297
        %v1304 = vmul.f32 %v1291, %v1298
        %v1305 = vadd.f32 %v1267, %v1299
        %v1306 = vadd.f32 %v1268, %v1300
        %v1307 = vadd.f32 %v1269, %v1301
        %v1308 = vadd.f32 %v1270, %v1302
        %v1309 = vadd.f32 %v1271, %v1303
        %v1310 = vadd.f32 %v1272, %v1304
        %1311 = vrot.lane.b32.xlu0 %v493, 96
        %v1312 = vpop.permute.xlu0 %1311
        %1313 = vrot.lane.b32.xlu0 %v495, 96
        %v1314 = vpop.permute.xlu0 %1313
        %1315 = vrot.lane.b32.xlu0 %v497, 96
        %v1316 = vpop.permute.xlu0 %1315
        %1317 = vrot.lane.b32.xlu0 %v494, 96
        %v1318 = vpop.permute.xlu0 %1317
        %1319 = vrot.lane.b32.xlu0 %v496, 96
        %v1320 = vpop.permute.xlu0 %1319
        %1321 = vrot.lane.b32.xlu0 %v498, 96
        %v1322 = vpop.permute.xlu0 %1321
        %vm1323 = vcmp.lt.s32.totalorder %v525, 96
        %v1324 = vsel %vm1323, %v1312, %v1318
        %v1325 = vsel %vm1323, %v1314, %v1320
        %v1326 = vsel %vm1323, %v1316, %v1322
        %v1327 = vsel %vm1323, %v1318, %v1312
        %v1328 = vsel %vm1323, %v1320, %v1314
        %v1329 = vsel %vm1323, %v1322, %v1316
        %s1330 = scalar_lea.vmem [#allocation3], 1056
        %v1331 = vld [vmem:[%s1330] sm:$0xff]
        %v1332 = vld [vmem:[%s1330 + $0x8] sm:$0xff]
        %v1333 = vld [vmem:[%s1330 + $0x10] sm:$0xff]
        %v1334 = vld [vmem:[%s1330 + $0x18] sm:$0xff]
        %v1335 = vld [vmem:[%s1330 + $0x20] sm:$0xff]
        %v1336 = vld [vmem:[%s1330 + $0x28] sm:$0xff]
        %v1337 = vmul.f32 %v1324, %v1331
        %v1338 = vmul.f32 %v1327, %v1332
        %v1339 = vmul.f32 %v1325, %v1333
        %v1340 = vmul.f32 %v1328, %v1334
        %v1341 = vmul.f32 %v1326, %v1335
        %v1342 = vmul.f32 %v1329, %v1336
        %v1343 = vadd.f32 %v1305, %v1337
        %v1344 = vadd.f32 %v1306, %v1338
        %v1345 = vadd.f32 %v1307, %v1339
        %v1346 = vadd.f32 %v1308, %v1340
        %v1347 = vadd.f32 %v1309, %v1341
        %v1348 = vadd.f32 %v1310, %v1342
        %1349 = vrot.lane.b32.xlu0 %v493, 95
        %v1350 = vpop.permute.xlu0 %1349
        %1351 = vrot.lane.b32.xlu0 %v495, 95
        %v1352 = vpop.permute.xlu0 %1351
        %1353 = vrot.lane.b32.xlu0 %v497, 95
        %v1354 = vpop.permute.xlu0 %1353
        %1355 = vrot.lane.b32.xlu0 %v494, 95
        %v1356 = vpop.permute.xlu0 %1355
        %1357 = vrot.lane.b32.xlu0 %v496, 95
        %v1358 = vpop.permute.xlu0 %1357
        %1359 = vrot.lane.b32.xlu0 %v498, 95
        %v1360 = vpop.permute.xlu0 %1359
        %vm1361 = vcmp.lt.s32.totalorder %v525, 95
        %v1362 = vsel %vm1361, %v1350, %v1356
        %v1363 = vsel %vm1361, %v1352, %v1358
        %v1364 = vsel %vm1361, %v1354, %v1360
        %v1365 = vsel %vm1361, %v1356, %v1350
        %v1366 = vsel %vm1361, %v1358, %v1352
        %v1367 = vsel %vm1361, %v1360, %v1354
        %s1368 = scalar_lea.vmem [#allocation3], 1104
        %v1369 = vld [vmem:[%s1368] sm:$0xff]
        %v1370 = vld [vmem:[%s1368 + $0x8] sm:$0xff]
        %v1371 = vld [vmem:[%s1368 + $0x10] sm:$0xff]
        %v1372 = vld [vmem:[%s1368 + $0x18] sm:$0xff]
        %v1373 = vld [vmem:[%s1368 + $0x20] sm:$0xff]
        %v1374 = vld [vmem:[%s1368 + $0x28] sm:$0xff]
        %v1375 = vmul.f32 %v1362, %v1369
        %v1376 = vmul.f32 %v1365, %v1370
        %v1377 = vmul.f32 %v1363, %v1371
        %v1378 = vmul.f32 %v1366, %v1372
        %v1379 = vmul.f32 %v1364, %v1373
        %v1380 = vmul.f32 %v1367, %v1374
        %v1381 = vadd.f32 %v1343, %v1375
        %v1382 = vadd.f32 %v1344, %v1376
        %v1383 = vadd.f32 %v1345, %v1377
        %v1384 = vadd.f32 %v1346, %v1378
        %v1385 = vadd.f32 %v1347, %v1379
        %v1386 = vadd.f32 %v1348, %v1380
        %1387 = vrot.lane.b32.xlu0 %v493, 94
        %v1388 = vpop.permute.xlu0 %1387
        %1389 = vrot.lane.b32.xlu0 %v495, 94
        %v1390 = vpop.permute.xlu0 %1389
        %1391 = vrot.lane.b32.xlu0 %v497, 94
        %v1392 = vpop.permute.xlu0 %1391
        %1393 = vrot.lane.b32.xlu0 %v494, 94
        %v1394 = vpop.permute.xlu0 %1393
        %1395 = vrot.lane.b32.xlu0 %v496, 94
        %v1396 = vpop.permute.xlu0 %1395
        %1397 = vrot.lane.b32.xlu0 %v498, 94
        %v1398 = vpop.permute.xlu0 %1397
        %vm1399 = vcmp.lt.s32.totalorder %v525, 94
        %v1400 = vsel %vm1399, %v1388, %v1394
        %v1401 = vsel %vm1399, %v1390, %v1396
        %v1402 = vsel %vm1399, %v1392, %v1398
        %v1403 = vsel %vm1399, %v1394, %v1388
        %v1404 = vsel %vm1399, %v1396, %v1390
        %v1405 = vsel %vm1399, %v1398, %v1392
        %s1406 = scalar_lea.vmem [#allocation3], 1152
        %v1407 = vld [vmem:[%s1406] sm:$0xff]
        %v1408 = vld [vmem:[%s1406 + $0x8] sm:$0xff]
        %v1409 = vld [vmem:[%s1406 + $0x10] sm:$0xff]
        %v1410 = vld [vmem:[%s1406 + $0x18] sm:$0xff]
        %v1411 = vld [vmem:[%s1406 + $0x20] sm:$0xff]
        %v1412 = vld [vmem:[%s1406 + $0x28] sm:$0xff]
        %v1413 = vmul.f32 %v1400, %v1407
        %v1414 = vmul.f32 %v1403, %v1408
        %v1415 = vmul.f32 %v1401, %v1409
        %v1416 = vmul.f32 %v1404, %v1410
        %v1417 = vmul.f32 %v1402, %v1411
        %v1418 = vmul.f32 %v1405, %v1412
        %v1419 = vadd.f32 %v1381, %v1413
        %v1420 = vadd.f32 %v1382, %v1414
        %v1421 = vadd.f32 %v1383, %v1415
        %v1422 = vadd.f32 %v1384, %v1416
        %v1423 = vadd.f32 %v1385, %v1417
        %v1424 = vadd.f32 %v1386, %v1418
        %v1425 = vld [vmem:[%s4] sm:$0xff]
        %v1426 = vld [vmem:[%s4 + $0x8] sm:$0xff]
        %v1427 = vld [vmem:[%s4 + $0x10] sm:$0xff]
        %1429 = vset.pattern.permute.xlu0 0
        %1430 = vperm.xlu0 %1429, %v1425
        %v1431 = vpop.permute.xlu0 %1430
        %1434 = vset.pattern.permute.xlu0 0
        %1435 = vperm.xlu0 %1434, %v1426
        %v1436 = vpop.permute.xlu0 %1435
        %1439 = vset.pattern.permute.xlu0 0
        %1440 = vperm.xlu0 %1439, %v1427
        %v1441 = vpop.permute.xlu0 %1440
        %v1443 = vadd.f32 %v1419, %v1431
        %v1444 = vadd.f32 %v1420, %v1431
        %v1445 = vadd.f32 %v1421, %v1436
        %v1446 = vadd.f32 %v1422, %v1436
        %v1447 = vadd.f32 %v1423, %v1441
        %v1448 = vadd.f32 %v1424, %v1441
        %v1449 = vmax.f32 %v1443, 0.0
        %v1450 = vmax.f32 %v1444, 0.0
        %v1451 = vmax.f32 %v1445, 0.0
        %v1452 = vmax.f32 %v1446, 0.0
        %v1453 = vmax.f32 %v1447, 0.0
        %v1454 = vmax.f32 %v1448, 0.0
        %v1455 = vadd.f32 %v1449, %v1450
        %1456 = vadd.xlane.f32.xlu0 %v1455
        %v1457 = vpop.xlane.xlu0 %1456
        %v1458 = vadd.f32 %v1451, %v1452
        %1459 = vadd.xlane.f32.xlu0 %v1458
        %v1460 = vpop.xlane.xlu0 %1459
        %v1461 = vadd.f32 %v1453, %v1454
        %1462 = vadd.xlane.f32.xlu0 %v1461
        %v1463 = vpop.xlane.xlu0 %1462
        %v1464 = vmul.f32 %v1457, 0.00390625
        %v1465 = vmul.f32 %v1460, 0.00390625
        %v1466 = vmul.f32 %v1463, 0.00390625
        %v1467 = vld [vmem:[%s5] sm:$0xff]
        %v1468 = vld [vmem:[%s5 + $0x8] sm:$0xff]
        %v1469 = vld [vmem:[%s5 + $0x10] sm:$0xff]
        %v1470 = vmul.f32 %v1464, %v1467
        %v1471 = vmul.f32 %v1465, %v1468
        %v1472 = vmul.f32 %v1466, %v1469
        %vm1473 = vcmask 7168
        %v1474 = vsel %vm1473, %v1470, 0.0
        %v1475 = vsel %vm1473, %v1471, 0.0
        %v1476 = vadd.f32 %v1474, %v1475
        %v1477 = vsel %vm1473, %v1472, 0.0
        %v1478 = vadd.f32 %v1476, %v1477
        %v1479 = vrot.slane %v1478, 4
        %v1480 = vadd.f32 %v1478, %v1479
        %v1481 = vrot.slane %v1480, 2
        %v1482 = vadd.f32 %v1480, %v1481
        %v1483 = vrot.slane %v1482, 1
        %v1484 = vadd.f32 %v1482, %v1483
        %v1485 = vld [vmem:[#allocation2] sm:$0x1]
        %v1486 = vadd.f32 %v1484, %v1485
        %v1487 = vmax.f32 %v1486, 0.0
        %v1488 = vld [vmem:[%s7] sm:$0xff]
        %v1489 = vld [vmem:[%s7 + $0x8] sm:$0xff]
        %v1490 = vld [vmem:[%s7 + $0x10] sm:$0xff]
        %v1491 = vperm.slane %v1487, 0
        %v1492 = vmul.f32 %v1488, %v1491
        %v1493 = vmul.f32 %v1489, %v1491
        %v1494 = vmul.f32 %v1490, %v1491
        %v1495 = vadd.f32 %v1492, 0.0
        %v1496 = vadd.f32 %v1493, 0.0
        %v1497 = vadd.f32 %v1494, 0.0
        %v1498 = vld [vmem:[%s8] sm:$0xff]
        %v1499 = vld [vmem:[%s8 + $0x8] sm:$0xff]
        %v1500 = vld [vmem:[%s8 + $0x10] sm:$0xff]
        %v1501 = vadd.f32 %v1495, %v1498
        %v1502 = vadd.f32 %v1496, %v1499
        %v1503 = vadd.f32 %v1497, %v1500
        %v1504 = vxor.u32 %v1501, 2147483648
        %v1505 = vxor.u32 %v1502, 2147483648
        %v1506 = vxor.u32 %v1503, 2147483648
        %v1507 = vmul.f32 %v1504, 1.442695
        %v1508 = vpow.pop %v1507
        %v1509 = vmul.f32 %v1505, 1.442695
        %v1510 = vpow.pop %v1509
        %v1511 = vmul.f32 %v1506, 1.442695
        %v1512 = vpow.pop %v1511
        %v1513 = vadd.f32 %v1508, 1.0
        %v1514 = vadd.f32 %v1510, 1.0
        %v1515 = vadd.f32 %v1512, 1.0
        %v1516 = vrcp.pop %v1513
        %v1517 = vmul.f32 %v1513, %v1516
        %v1518 = vsub.f32 1.0, %v1517
        %v1519 = vmul.f32 %v1516, %v1518
        %v1520 = vadd.f32 %v1516, %v1519
        %vm1521 = vweird.f32 %v1513
        %vm1522 = vweird.f32 %v1516
        %vm1523 = vmor %vm1521, %vm1522
        %v1524 = vsel %vm1523, %v1516, %v1520
        %v1525 = vand.u32 2147483647, %v1513
        %vm1526 = vcmp.eq.f32.partialorder %v1525, 8.507059e+37
        %v1527 = vand.u32 %v1513, 2147483648
        %v1528 = vor.u32 1.1754944e-38, %v1527
        %v1529 = vsel %vm1526, %v1528, %v1524
        %v1530 = vmul.f32 1.0, %v1529
        %v1531 = vrcp.pop %v1514
        %v1532 = vmul.f32 %v1514, %v1531
        %v1533 = vsub.f32 1.0, %v1532
        %v1534 = vmul.f32 %v1531, %v1533
        %v1535 = vadd.f32 %v1531, %v1534
        %vm1536 = vweird.f32 %v1514
        %vm1537 = vweird.f32 %v1531
        %vm1538 = vmor %vm1536, %vm1537
        %v1539 = vsel %vm1538, %v1531, %v1535
        %v1540 = vand.u32 2147483647, %v1514
        %vm1541 = vcmp.eq.f32.partialorder %v1540, 8.507059e+37
        %v1542 = vand.u32 %v1514, 2147483648
        %v1543 = vor.u32 1.1754944e-38, %v1542
        %v1544 = vsel %vm1541, %v1543, %v1539
        %v1545 = vmul.f32 1.0, %v1544
        %v1546 = vrcp.pop %v1515
        %v1547 = vmul.f32 %v1515, %v1546
        %v1548 = vsub.f32 1.0, %v1547
        %v1549 = vmul.f32 %v1546, %v1548
        %v1550 = vadd.f32 %v1546, %v1549
        %vm1551 = vweird.f32 %v1515
        %vm1552 = vweird.f32 %v1546
        %vm1553 = vmor %vm1551, %vm1552
        %v1554 = vsel %vm1553, %v1546, %v1550
        %v1555 = vand.u32 2147483647, %v1515
        %vm1556 = vcmp.eq.f32.partialorder %v1555, 8.507059e+37
        %v1557 = vand.u32 %v1515, 2147483648
        %v1558 = vor.u32 1.1754944e-38, %v1557
        %v1559 = vsel %vm1556, %v1558, %v1554
        %v1560 = vmul.f32 1.0, %v1559
        %1562 = vset.pattern.permute.xlu0 0
        %1563 = vperm.xlu0 %1562, %v1530
        %v1564 = vpop.permute.xlu0 %1563
        %1567 = vset.pattern.permute.xlu0 0
        %1568 = vperm.xlu0 %1567, %v1545
        %v1569 = vpop.permute.xlu0 %1568
        %1572 = vset.pattern.permute.xlu0 0
        %1573 = vperm.xlu0 %1572, %v1560
        %v1574 = vpop.permute.xlu0 %1573
        %v1576 = vmul.f32 %v1449, %v1564
        %v1577 = vmul.f32 %v1450, %v1564
        %v1578 = vmul.f32 %v1451, %v1569
        %v1579 = vmul.f32 %v1452, %v1569
        %v1580 = vmul.f32 %v1453, %v1574
        %v1581 = vmul.f32 %v1454, %v1574
        %v1582 = vld [vmem:[%s9] sm:$0x3]
        %v1583 = vpack.c.bf16 %v1578, %v1576
        %v1584 = vpack.c.bf16 %v1579, %v1577
        %v1585 = vpack.c.bf16 %v1580, %v1580
        %v1586 = vpack.c.bf16 %v1581, %v1581
        %v1587 = vld [vmem:[%s10] sm:$0xf]
        %1589 = vset.pattern.permute.xlu0 0
        %1590 = vperm.xlu0 %1589, %v1587
        %v1591 = vpop.permute.xlu0 %1590
        %vm1593 = vcmask 195584
        %v1595 = vsel %vm1593, %v1582, 0
        %vm1597 = vcmask 1043456
        %v1599 = vsel %vm1597, %v1585, 0
        %v1602 = vsel %vm1597, %v1586, 0
        %1604 = vmatpush.bf16.msra.mxu0 0
        %1605 = vmatpush.bf16.msra.mxu0 0
        %1606 = vmatpush.bf16.msra.mxu0 0
        %1607 = vmatpush.bf16.msra.mxu0 0
        %1608 = vmatpush.bf16.msra.mxu0 0
        %1609 = vmatpush.bf16.msra.mxu0 0
        %1610 = vmatpush.bf16.msra.mxu0 %v1599
        %1611 = vmatpush.bf16.msra.mxu0 %v1583
        %1612 = vmatmul.bf16.gmra.mxu0 %v1595
        %v1613 = vpop.f32.mrf.mxu0
        %v1614 = vadd.f32 %v1591, %v1613
        %v1615 = vpop.f32.mrf.mxu0
        %1616 = vdwg.mxu0
        %1617 = vmatpush.bf16.msra.mxu0 0
        %1618 = vmatpush.bf16.msra.mxu0 0
        %1619 = vmatpush.bf16.msra.mxu0 0
        %1620 = vmatpush.bf16.msra.mxu0 0
        %1621 = vmatpush.bf16.msra.mxu0 0
        %1622 = vmatpush.bf16.msra.mxu0 0
        %1623 = vmatpush.bf16.msra.mxu0 %v1602
        %1624 = vmatpush.bf16.msra.mxu0 %v1584
        %1625 = vmatmul.bf16.gmra.mxu0 %v1595
        %v1626 = vpop.f32.mrf.mxu0
        %v1627 = vadd.f32 %v1591, %v1626
        %v1628 = vpop.f32.mrf.mxu0
        %1629 = vdwg.mxu0
        %1630 = vst [vmem:[#allocation1] ss:$2 sm:$0xff] %v405
        %v1631 = vld.sshfl [vmem:[#allocation1] sm:$0xff pattern:$0x75316420]
        %v1632 = vld.sshfl [vmem:[#allocation1 + $0x8] sm:$0xff pattern:$0x75316420]
        %v1635 = vadd.f32 %v1614, %v1631
        %v1636 = vadd.f32 %v1627, %v1632
        %v1639 = vrot.slane %v1636, 4
        %v1640 = vsel %vm1597, %v1635, %v1639
        %1642 = vst [vmem:[%s398] sm:$0xff] %v1640
        %s1643 = sand.u32 %s272, 1
        %s1644 = scalar_lea.sflag [#allocation5], %s1643
        %s1645 = sand.u32 %s272, 1
        %s1646 = smul.addr %s1645, 8
        %s1647 = scalar_lea.vmem [#allocation6], %s1646
        // Predicated region
        $region69: #{tpu_custom_call.1} parent=63 // pred_check
          %p1648 = pneg %p282
        $region70: #{tpu_custom_call.1} parent=63 // pred_check_branch
          %1650 = sbr.rel (%p1648) target = $region72
        $region71: #{tpu_custom_call.1} parent=63 // pred_region
          %1652 = vsyncadd %s1644, 0
          %s1653 = smul.addr %s28, 2
          %s1654 = smul.addr %s1653, 4
          %s1655 = scalar_lea.hbm %s11, %s1654
          %s1657 = sshll.u32 %s1647, 4
          %s1658 = int_to_ptr.vmem [resolvable:$true] %s1657
          %s1659 = sshll.u32 %s1655, 4
          %s1660 = int_to_ptr.hbm [resolvable:$true] %s1659
          %1662 = dma.vmem_to_hbm [thread:$0]  %s1658, 128, %s1660, %s1644
        $region72: #{tpu_custom_call.1} parent=63 // pred_fallthru
          _
      $region64: #{tpu_custom_call.1} parent=5 // pred_fallthru
        _
      %p1663 = scmp.le.s32.totalorder 2, %s23
      // Predicated region
      $region73: #{tpu_custom_call.1} parent=5 // pred_check
        %p1664 = pneg %p1663
      $region74: #{tpu_custom_call.1} parent=5 // pred_check_branch
        %1666 = sbr.rel (%p1664) target = $region76
      $region75: #{tpu_custom_call.1} parent=5 // pred_region
        %s1667 = ssub.s32 %s23, 2
        // Predicated region
        $region77: #{tpu_custom_call.1} parent=75 // pred_check
          %p1668 = pneg %p288
        $region78: #{tpu_custom_call.1} parent=75 // pred_check_branch
          %1670 = sbr.rel (%p1668) target = $region80
        $region79: #{tpu_custom_call.1} parent=75 // pred_region
          %s1671 = sand.u32 %s273, 1
          %s1672 = scalar_lea.sflag [#allocation5], %s1671
          %s1673 = sand.u32 %s273, 1
          %s1674 = smul.addr %s1673, 8
          %s1675 = scalar_lea.vmem [#allocation6], %s1674
          %1677 = dma.done %s1672, 128
        $region80: #{tpu_custom_call.1} parent=75 // pred_fallthru
          _
      $region76: #{tpu_custom_call.1} parent=5 // pred_fallthru
        _
    $region6: #{tpu_custom_call.1} parent=1 // loop_footer
      %s27 = sadd.s32 1, %s23
    $region7: #{tpu_custom_call.1} parent=1 // loop_footer_branch
      %22 = sbr.rel target = $region3
    $region8: #{tpu_custom_call.1} parent=1 // loop_exit
      _
    %1678 = vsyncpa [#allocation4], 1
    %s1679 = scalar_lea.sflag [#allocation4], 1
    %1680 = vsyncpa %s1679, 1
    %1681 = vsyncpa [#allocation5], 1
    %s1682 = scalar_lea.sflag [#allocation5], 1
    %1683 = vsyncpa %s1682, 1

</llo_original>
